<compile_context>
chip_gen: v6e
topology: v6e:2x2x1
jax: 0.10.0
libtpu: 0.0.40
codegen_flags: <defaults>
</compile_context>

<pallas_src>
import functools

import jax
import jax.numpy as jnp
from jax.experimental import pallas as pl
from jax.experimental.pallas import tpu as pltpu

EPS = 1e-5  # nn.LayerNorm default eps


# ----------------------------- kernel helpers --------------------------------
def _layernorm(h, g, b):
    # one-pass variance: mean(h*h) - mu^2 (independent reductions; clamp >= 0
    # guards against tiny negative values from cancellation, verified vs ref).
    mu = jnp.mean(h, axis=-1, keepdims=True)
    var = jnp.maximum(jnp.mean(h * h, axis=-1, keepdims=True) - mu * mu, 0.0)
    return (h - mu) * jax.lax.rsqrt(var + EPS) * g + b


def _linear(h, w, b):
    return jnp.dot(h, w, preferred_element_type=jnp.float32) + b


# ----------------------------- kernel -----------------------------------------
def game_state_kernel(x_ref, w0_ref, wres_ref, wh2_ref, vh_ref, vh2_ref,
                      wout_ref, bout_ref, o_ref, *, seq_len):
    x = x_ref[...]                                   # (R, Din), R = bpt*seq_len
    rows = x.shape[0]
    bpt = rows // seq_len                            # whole batches in this tile

    vh = vh_ref[...]                                 # (15, H)  vector bank
    vh2 = vh2_ref[...]                               # (5, H/2) vector bank
    b0, g0, be0 = vh[0:1], vh[1:2], vh[2:3]
    ba1, bc1, gc, bec, wa2 = (vh2[i:i + 1] for i in range(5))

    # feature_extractor: Linear -> LayerNorm -> ReLU -> Dropout (eval identity)
    feat = _layernorm(_linear(x, w0_ref[...], b0), g0, be0)
    feat = jnp.maximum(feat, 0.0)

    # two residual blocks: Linear->LN->ReLU->Dropout->Linear->LN, then add
    for blk in range(2):
        base = 3 + 6 * blk
        b1, g1, be1, b2, g2, be2 = (vh[base + i:base + i + 1] for i in range(6))
        h = _layernorm(_linear(feat, wres_ref[2 * blk], b1), g1, be1)
        h = jnp.maximum(h, 0.0)
        h = _layernorm(_linear(h, wres_ref[2 * blk + 1], b2), g2, be2)
        feat = feat + h

    # attention: Linear -> Tanh -> Linear(->1); softmax over each batch's
    # length-seq_len contiguous run of rows (== torch softmax(dim=1)).
    a = jnp.tanh(_linear(feat, wh2_ref[0], ba1))                       # (R, H/2)
    # Per-row score on the VPU + one lane reduce (no M=1 MXU push).
    scores = jnp.sum(a * wa2, axis=-1, keepdims=True)                  # (R, 1)
    # (ba2 omitted: a uniform shift has exactly no effect under softmax.)

    # One-hot segment membership: in_seg[i, b] = (i // seq_len == b).
    if (seq_len & (seq_len - 1)) == 0:                                 # pow2 seq
        shift = seq_len.bit_length() - 1
        rseg = jax.lax.broadcasted_iota(jnp.int32, (rows, bpt), 0) >> shift
    else:
        rseg = jax.lax.broadcasted_iota(jnp.int32, (rows, bpt), 0) // seq_len
    bidx = jax.lax.broadcasted_iota(jnp.int32, (rows, bpt), 1)
    in_seg = rseg == bidx                                              # (R, bpt)

    # Per-segment max / sum-of-exp, then gather back per row (one-hot select).
    masked = jnp.where(in_seg, scores, -jnp.inf)                       # (R, bpt)
    seg_max = jnp.max(masked, axis=0, keepdims=True)                   # (1, bpt)
    seg_sum = jnp.sum(jnp.exp(masked - seg_max),
                      axis=0, keepdims=True)                           # (1, bpt)
    row_max = jnp.sum(jnp.where(in_seg, seg_max, 0.0),
                      axis=-1, keepdims=True)                          # (R, 1)
    row_sum = jnp.sum(jnp.where(in_seg, seg_sum, 0.0),
                      axis=-1, keepdims=True)                          # (R, 1)
    attn = jnp.exp(scores - row_max) / row_sum                         # (R, 1)
    attended = feat * attn

    # command_predictor: Linear -> ReLU -> LayerNorm -> Dropout(id) -> Linear
    h = jnp.maximum(_linear(attended, wh2_ref[1], bc1), 0.0)
    h = _layernorm(h, gc, bec)
    # Lane-dense full-tile store: wout/bout are zero-padded to a 128 multiple.
    o_ref[...] = _linear(h, wout_ref[...], bout_ref[...])


# ----------------------------- packing / wrapper ------------------------------
def pack_params(params):
    (w0, b0, g0, be0,
     w1a, b1a, g1a, be1a, w2a, b2a, g2a, be2a,
     w1b, b1b, g1b, be1b, w2b, b2b, g2b, be2b,
     wa1, ba1, wa2, ba2,
     wc1, bc1, gc, bec, wc2, bc2) = params
    del ba2  # uniform shift under softmax(dim=1): exactly no effect on output

    wres = jnp.stack([w1a, w2a, w1b, w2b])                           # (4, H, H)
    wh2 = jnp.stack([wa1, wc1])                                      # (2, H, H/2)
    vh = jnp.concatenate([b0, g0, be0,
                          b1a, g1a, be1a, b2a, g2a, be2a,
                          b1b, g1b, be1b, b2b, g2b, be2b], axis=0)   # (15, H)
    vh2 = jnp.concatenate([ba1, bc1, gc, bec, wa2], axis=0)          # (5, H/2)
    dout = wc2.shape[1]
    dpad = ((dout + 127) // 128) * 128       # lane-dense output width
    wout = jnp.pad(wc2, ((0, 0), (0, dpad - dout)))
    bout = jnp.pad(bc2, ((0, 0), (0, dpad - dout)))
    return (w0, wres, wh2, vh, vh2, wout, bout), dout, dpad


def _batches_per_tile(batch, seq, target_rows=256, min_grid=2):
    """Whole batches per grid step.

    - softmax segments must not straddle tiles, so bpt must divide batch;
    - rows = bpt*seq must be a multiple of 8 (sublane) unless block == array;
    - keep grid >= min_grid when batch allows so v7x's second TensorCore gets
      work (costs only one extra ~0.35us step on single-TC v5e/v6e);
    - target_rows stays moderate: softmax scratch is O(rows * rows/seq).
    """
    cap = max(1, target_rows // max(seq, 1))
    if batch >= min_grid:
        cap = min(cap, batch // min_grid)
    bpt = max(1, min(batch, cap))
    while bpt > 1 and (batch % bpt != 0 or (bpt * seq) % 8 != 0):
        bpt -= 1
    if batch % bpt != 0 or ((bpt * seq) % 8 != 0 and bpt != batch):
        bpt = batch          # single tile: block == full array (layout-exempt)
    return bpt


def game_state_forward(x, params):
    B, S, Din = x.shape
    packed, dout, dpad = pack_params(params)
    w0, wres, wh2, vh, vh2, wout, bout = packed
    H = w0.shape[1]

    bpt = _batches_per_tile(B, S)
    rows = bpt * S
    grid = (B // bpt,)
    x2 = x.reshape(B * S, Din)

    in_specs = [
        pl.BlockSpec((rows, Din), lambda i: (i, 0)),      # row tile of inputs
        pl.BlockSpec(w0.shape, lambda i: (0, 0)),         # fully resident params
        pl.BlockSpec(wres.shape, lambda i: (0, 0, 0)),
        pl.BlockSpec(wh2.shape, lambda i: (0, 0, 0)),
        pl.BlockSpec(vh.shape, lambda i: (0, 0)),
        pl.BlockSpec(vh2.shape, lambda i: (0, 0)),
        pl.BlockSpec(wout.shape, lambda i: (0, 0)),
        pl.BlockSpec(bout.shape, lambda i: (0, 0)),
    ]
    out_spec = pl.BlockSpec((rows, dpad), lambda i: (i, 0))

    flops = 2 * B * S * (Din * H + 4 * H * H + 2 * H * (H // 2) + (H // 2) * dpad)
    transcendentals = B * S * (H // 2) + B * S * (bpt + 1)     # tanh + exp
    bytes_accessed = 4 * int(x2.size + sum(int(p.size) for p in packed)
                             + B * S * dpad)

    out = pl.pallas_call(
        functools.partial(game_state_kernel, seq_len=S),
        out_shape=jax.ShapeDtypeStruct((B * S, dpad), jnp.float32),
        grid=grid,
        in_specs=in_specs,
        out_specs=out_spec,
        compiler_params=pltpu.CompilerParams(
            dimension_semantics=("parallel",)),
        cost_estimate=pl.CostEstimate(flops=int(flops),
                                      transcendentals=int(transcendentals),
                                      bytes_accessed=int(bytes_accessed)),
    )(x2, w0, wres, wh2, vh, vh2, wout, bout)

    # TODO(synk): at scale, return the padded (B*S, 128) slab directly and let
    # the consumer slice, to skip this extra full-array copy.
    return out[:, :dout].reshape(B, S, dout)


# ----------------------------- parameter init ---------------------------------
def init_params(key, input_size, hidden_size, output_size):
    h, h2 = hidden_size, hidden_size // 2
    keys = iter(jax.random.split(key, 32))

    def linear(din, dnout):
        w = jax.random.normal(next(keys), (din, dnout), jnp.float32) / jnp.sqrt(
            float(din))
        b = jax.random.normal(next(keys), (1, dnout), jnp.float32) * 0.02
        return w, b

    def layernorm(dim):
        return jnp.ones((1, dim), jnp.float32), jnp.zeros((1, dim), jnp.float32)

    params = []
    w0, b0 = linear(input_size, h)
    g0, be0 = layernorm(h)
    params += [w0, b0, g0, be0]
    for _ in range(2):
        w1, b1 = linear(h, h)
        g1, be1 = layernorm(h)
        w2, b2 = linear(h, h)
        g2, be2 = layernorm(h)
        params += [w1, b1, g1, be1, w2, b2, g2, be2]
    wa1, ba1 = linear(h, h2)
    wa2_col, ba2 = linear(h2, 1)
    wa2 = wa2_col.T                     # stored as a (1, h2) row vector
    params += [wa1, ba1, wa2, ba2]
    wc1, bc1 = linear(h, h2)
    gc, bec = layernorm(h2)
    wc2, bc2 = linear(h2, output_size)
    params += [wc1, bc1, gc, bec, wc2, bc2]
    return tuple(params)


# ----------------------------- pure-JAX reference -----------------------------
def reference(x, params):
    (w0, b0, g0, be0,
     w1a, b1a, g1a, be1a, w2a, b2a, g2a, be2a,
     w1b, b1b, g1b, be1b, w2b, b2b, g2b, be2b,
     wa1, ba1, wa2, ba2,
     wc1, bc1, gc, bec, wc2, bc2) = params

    def ln(v, g, b):
        mu = jnp.mean(v, axis=-1, keepdims=True)
        var = jnp.mean((v - mu) ** 2, axis=-1, keepdims=True)
        return (v - mu) / jnp.sqrt(var + EPS) * g + b

    feat = jnp.maximum(ln(x @ w0 + b0, g0, be0), 0.0)
    for (w1, b1, g1, be1, w2, b2, g2, be2) in (
            (w1a, b1a, g1a, be1a, w2a, b2a, g2a, be2a),
            (w1b, b1b, g1b, be1b, w2b, b2b, g2b, be2b)):
        h = jnp.maximum(ln(feat @ w1 + b1, g1, be1), 0.0)
        h = ln(h @ w2 + b2, g2, be2)
        feat = feat + h
    a = jnp.tanh(feat @ wa1 + ba1)
    scores = jnp.sum(a * wa2, axis=-1, keepdims=True) + ba2
    attn = jax.nn.softmax(scores, axis=1)
    attended = feat * attn
    h = jnp.maximum(attended @ wc1 + bc1, 0.0)
    h = ln(h, gc, bec)
    return h @ wc2 + bc2


# ----------------------------- main --------------------------------------------
if __name__ == "__main__":
    B, S = 4, 8                      # grid=(2,), bpt=2: exercises the segmented
    input_size, hidden_size, output_size = 16, 32, 8   # softmax AND megacore path

    key = jax.random.PRNGKey(0)
    kx, kp = jax.random.split(key)
    x = jax.random.normal(kx, (B, S, input_size), jnp.float32)
    params = init_params(kp, input_size, hidden_size, output_size)

    out = game_state_forward(x, params)
    out = jax.block_until_ready(out)

    ref = reference(x, params)
    assert out.shape == (B, S, output_size), out.shape
    assert bool(jnp.all(jnp.isfinite(out)))
    assert bool(jnp.allclose(out, ref, rtol=1e-2, atol=1e-2)), \
        float(jnp.max(jnp.abs(out - ref)))
    print("KERNEL_OK")
</pallas_src>

<mosaic_0001>
module attributes {stable_mosaic.version = 11 : i64} {
  func.func @game_state_kernel(%arg0: i32, %arg1: memref<16x16xf32, #tpu.memory_space<vmem>>, %arg2: memref<16x32xf32, #tpu.memory_space<vmem>>, %arg3: memref<4x32x32xf32, #tpu.memory_space<vmem>>, %arg4: memref<2x32x16xf32, #tpu.memory_space<vmem>>, %arg5: memref<15x32xf32, #tpu.memory_space<vmem>>, %arg6: memref<5x16xf32, #tpu.memory_space<vmem>>, %arg7: memref<16x128xf32, #tpu.memory_space<vmem>>, %arg8: memref<1x128xf32, #tpu.memory_space<vmem>>, %arg9: memref<16x128xf32, #tpu.memory_space<vmem>>) attributes {dimension_semantics = [#tpu.dimension_semantics<parallel>], iteration_bounds = array<i64: 2>, scalar_prefetch = 0 : i64, scratch_operands = 0 : i64, tpu.core_type = #tpu.core_type<tc>, window_params = [{transform_indices = @transform_0, window_bounds = array<i64: 16, 16>}, {pipeline_mode = #tpu.pipeline_mode<synchronous>, transform_indices = @transform_1, window_bounds = array<i64: 16, 32>}, {pipeline_mode = #tpu.pipeline_mode<synchronous>, transform_indices = @transform_2, window_bounds = array<i64: 4, 32, 32>}, {pipeline_mode = #tpu.pipeline_mode<synchronous>, transform_indices = @transform_3, window_bounds = array<i64: 2, 32, 16>}, {pipeline_mode = #tpu.pipeline_mode<synchronous>, transform_indices = @transform_4, window_bounds = array<i64: 15, 32>}, {pipeline_mode = #tpu.pipeline_mode<synchronous>, transform_indices = @transform_5, window_bounds = array<i64: 5, 16>}, {pipeline_mode = #tpu.pipeline_mode<synchronous>, transform_indices = @transform_6, window_bounds = array<i64: 16, 128>}, {pipeline_mode = #tpu.pipeline_mode<synchronous>, transform_indices = @transform_7, window_bounds = array<i64: 1, 128>}, {transform_indices = @transform_8, window_bounds = array<i64: 16, 128>}]} {
    %c0 = arith.constant 0 : index
    %c0_0 = arith.constant 0 : index
    %0 = vector.load %arg1[%c0, %c0_0] : memref<16x16xf32, #tpu.memory_space<vmem>>, vector<16x16xf32>
    %c0_1 = arith.constant 0 : index
    %c0_2 = arith.constant 0 : index
    %1 = vector.load %arg5[%c0_1, %c0_2] : memref<15x32xf32, #tpu.memory_space<vmem>>, vector<15x32xf32>
    %c0_3 = arith.constant 0 : index
    %c0_4 = arith.constant 0 : index
    %2 = vector.load %arg6[%c0_3, %c0_4] : memref<5x16xf32, #tpu.memory_space<vmem>>, vector<5x16xf32>
    %3 = vector.extract_strided_slice %1 {offsets = [0, 0], sizes = [1, 32], strides = [1, 1]} : vector<15x32xf32> to vector<1x32xf32>
    %4 = vector.extract_strided_slice %1 {offsets = [1, 0], sizes = [1, 32], strides = [1, 1]} : vector<15x32xf32> to vector<1x32xf32>
    %5 = vector.extract_strided_slice %1 {offsets = [2, 0], sizes = [1, 32], strides = [1, 1]} : vector<15x32xf32> to vector<1x32xf32>
    %6 = vector.extract_strided_slice %2 {offsets = [0, 0], sizes = [1, 16], strides = [1, 1]} : vector<5x16xf32> to vector<1x16xf32>
    %7 = vector.extract_strided_slice %2 {offsets = [1, 0], sizes = [1, 16], strides = [1, 1]} : vector<5x16xf32> to vector<1x16xf32>
    %8 = vector.extract_strided_slice %2 {offsets = [2, 0], sizes = [1, 16], strides = [1, 1]} : vector<5x16xf32> to vector<1x16xf32>
    %9 = vector.extract_strided_slice %2 {offsets = [3, 0], sizes = [1, 16], strides = [1, 1]} : vector<5x16xf32> to vector<1x16xf32>
    %10 = vector.extract_strided_slice %2 {offsets = [4, 0], sizes = [1, 16], strides = [1, 1]} : vector<5x16xf32> to vector<1x16xf32>
    %c0_5 = arith.constant 0 : index
    %c0_6 = arith.constant 0 : index
    %11 = vector.load %arg2[%c0_5, %c0_6] : memref<16x32xf32, #tpu.memory_space<vmem>>, vector<16x32xf32>
    %cst = arith.constant dense<0.000000e+00> : vector<16x32xf32>
    %12 = tpu.matmul %0, %11, %cst {dimension_numbers = #tpu.dot_dimension_numbers<[1], [0], [0], [1], [0, 0, 1, 1], [], []>} : vector<16x16xf32>, vector<16x32xf32>, vector<16x32xf32> -> vector<16x32xf32>
    %13 = vector.broadcast %3 : vector<1x32xf32> to vector<16x32xf32>
    %14 = arith.addf %12, %13 : vector<16x32xf32>
    %cst_7 = arith.constant dense<0.000000e+00> : vector<16xf32>
    %15 = vector.multi_reduction <add>, %14, %cst_7 [1] : vector<16x32xf32> to vector<16xf32>
    %16 = vector.shape_cast %15 : vector<16xf32> to vector<16x1xf32>
    %cst_8 = arith.constant 3.200000e+01 : f32
    %17 = vector.broadcast %cst_8 : f32 to vector<16x1xf32>
    %18 = arith.divf %16, %17 : vector<16x1xf32>
    %19 = arith.mulf %14, %14 : vector<16x32xf32>
    %cst_9 = arith.constant dense<0.000000e+00> : vector<16xf32>
    %20 = vector.multi_reduction <add>, %19, %cst_9 [1] : vector<16x32xf32> to vector<16xf32>
    %21 = vector.shape_cast %20 : vector<16xf32> to vector<16x1xf32>
    %cst_10 = arith.constant 3.200000e+01 : f32
    %22 = vector.broadcast %cst_10 : f32 to vector<16x1xf32>
    %23 = arith.divf %21, %22 : vector<16x1xf32>
    %24 = arith.mulf %18, %18 : vector<16x1xf32>
    %25 = arith.subf %23, %24 : vector<16x1xf32>
    %cst_11 = arith.constant 0.000000e+00 : f32
    %26 = vector.broadcast %cst_11 : f32 to vector<16x1xf32>
    %27 = arith.maximumf %25, %26 : vector<16x1xf32>
    %28 = vector.broadcast %18 : vector<16x1xf32> to vector<16x32xf32>
    %29 = arith.subf %14, %28 : vector<16x32xf32>
    %cst_12 = arith.constant 9.99999974E-6 : f32
    %30 = vector.broadcast %cst_12 : f32 to vector<16x1xf32>
    %31 = arith.addf %27, %30 : vector<16x1xf32>
    %32 = math.rsqrt %31 : vector<16x1xf32>
    %33 = vector.broadcast %32 : vector<16x1xf32> to vector<16x32xf32>
    %34 = arith.mulf %29, %33 : vector<16x32xf32>
    %35 = vector.broadcast %4 : vector<1x32xf32> to vector<16x32xf32>
    %36 = arith.mulf %34, %35 : vector<16x32xf32>
    %37 = vector.broadcast %5 : vector<1x32xf32> to vector<16x32xf32>
    %38 = arith.addf %36, %37 : vector<16x32xf32>
    %cst_13 = arith.constant 0.000000e+00 : f32
    %39 = vector.broadcast %cst_13 : f32 to vector<16x32xf32>
    %40 = arith.maximumf %38, %39 : vector<16x32xf32>
    %41 = vector.extract_strided_slice %1 {offsets = [3, 0], sizes = [1, 32], strides = [1, 1]} : vector<15x32xf32> to vector<1x32xf32>
    %42 = vector.extract_strided_slice %1 {offsets = [4, 0], sizes = [1, 32], strides = [1, 1]} : vector<15x32xf32> to vector<1x32xf32>
    %43 = vector.extract_strided_slice %1 {offsets = [5, 0], sizes = [1, 32], strides = [1, 1]} : vector<15x32xf32> to vector<1x32xf32>
    %44 = vector.extract_strided_slice %1 {offsets = [6, 0], sizes = [1, 32], strides = [1, 1]} : vector<15x32xf32> to vector<1x32xf32>
    %45 = vector.extract_strided_slice %1 {offsets = [7, 0], sizes = [1, 32], strides = [1, 1]} : vector<15x32xf32> to vector<1x32xf32>
    %46 = vector.extract_strided_slice %1 {offsets = [8, 0], sizes = [1, 32], strides = [1, 1]} : vector<15x32xf32> to vector<1x32xf32>
    %c0_14 = arith.constant 0 : index
    %c0_15 = arith.constant 0 : index
    %c0_16 = arith.constant 0 : index
    %47 = vector.load %arg3[%c0_14, %c0_15, %c0_16] : memref<4x32x32xf32, #tpu.memory_space<vmem>>, vector<1x32x32xf32>
    %48 = vector.shape_cast %47 : vector<1x32x32xf32> to vector<32x32xf32>
    %cst_17 = arith.constant dense<0.000000e+00> : vector<16x32xf32>
    %49 = tpu.matmul %40, %48, %cst_17 {dimension_numbers = #tpu.dot_dimension_numbers<[1], [0], [0], [1], [0, 0, 1, 1], [], []>} : vector<16x32xf32>, vector<32x32xf32>, vector<16x32xf32> -> vector<16x32xf32>
    %50 = vector.broadcast %41 : vector<1x32xf32> to vector<16x32xf32>
    %51 = arith.addf %49, %50 : vector<16x32xf32>
    %cst_18 = arith.constant dense<0.000000e+00> : vector<16xf32>
    %52 = vector.multi_reduction <add>, %51, %cst_18 [1] : vector<16x32xf32> to vector<16xf32>
    %53 = vector.shape_cast %52 : vector<16xf32> to vector<16x1xf32>
    %cst_19 = arith.constant 3.200000e+01 : f32
    %54 = vector.broadcast %cst_19 : f32 to vector<16x1xf32>
    %55 = arith.divf %53, %54 : vector<16x1xf32>
    %56 = arith.mulf %51, %51 : vector<16x32xf32>
    %cst_20 = arith.constant dense<0.000000e+00> : vector<16xf32>
    %57 = vector.multi_reduction <add>, %56, %cst_20 [1] : vector<16x32xf32> to vector<16xf32>
    %58 = vector.shape_cast %57 : vector<16xf32> to vector<16x1xf32>
    %cst_21 = arith.constant 3.200000e+01 : f32
    %59 = vector.broadcast %cst_21 : f32 to vector<16x1xf32>
    %60 = arith.divf %58, %59 : vector<16x1xf32>
    %61 = arith.mulf %55, %55 : vector<16x1xf32>
    %62 = arith.subf %60, %61 : vector<16x1xf32>
    %cst_22 = arith.constant 0.000000e+00 : f32
    %63 = vector.broadcast %cst_22 : f32 to vector<16x1xf32>
    %64 = arith.maximumf %62, %63 : vector<16x1xf32>
    %65 = vector.broadcast %55 : vector<16x1xf32> to vector<16x32xf32>
    %66 = arith.subf %51, %65 : vector<16x32xf32>
    %cst_23 = arith.constant 9.99999974E-6 : f32
    %67 = vector.broadcast %cst_23 : f32 to vector<16x1xf32>
    %68 = arith.addf %64, %67 : vector<16x1xf32>
    %69 = math.rsqrt %68 : vector<16x1xf32>
    %70 = vector.broadcast %69 : vector<16x1xf32> to vector<16x32xf32>
    %71 = arith.mulf %66, %70 : vector<16x32xf32>
    %72 = vector.broadcast %42 : vector<1x32xf32> to vector<16x32xf32>
    %73 = arith.mulf %71, %72 : vector<16x32xf32>
    %74 = vector.broadcast %43 : vector<1x32xf32> to vector<16x32xf32>
    %75 = arith.addf %73, %74 : vector<16x32xf32>
    %cst_24 = arith.constant 0.000000e+00 : f32
    %76 = vector.broadcast %cst_24 : f32 to vector<16x32xf32>
    %77 = arith.maximumf %75, %76 : vector<16x32xf32>
    %c1 = arith.constant 1 : index
    %c0_25 = arith.constant 0 : index
    %c0_26 = arith.constant 0 : index
    %78 = vector.load %arg3[%c1, %c0_25, %c0_26] : memref<4x32x32xf32, #tpu.memory_space<vmem>>, vector<1x32x32xf32>
    %79 = vector.shape_cast %78 : vector<1x32x32xf32> to vector<32x32xf32>
    %cst_27 = arith.constant dense<0.000000e+00> : vector<16x32xf32>
    %80 = tpu.matmul %77, %79, %cst_27 {dimension_numbers = #tpu.dot_dimension_numbers<[1], [0], [0], [1], [0, 0, 1, 1], [], []>} : vector<16x32xf32>, vector<32x32xf32>, vector<16x32xf32> -> vector<16x32xf32>
    %81 = vector.broadcast %44 : vector<1x32xf32> to vector<16x32xf32>
    %82 = arith.addf %80, %81 : vector<16x32xf32>
    %cst_28 = arith.constant dense<0.000000e+00> : vector<16xf32>
    %83 = vector.multi_reduction <add>, %82, %cst_28 [1] : vector<16x32xf32> to vector<16xf32>
    %84 = vector.shape_cast %83 : vector<16xf32> to vector<16x1xf32>
    %cst_29 = arith.constant 3.200000e+01 : f32
    %85 = vector.broadcast %cst_29 : f32 to vector<16x1xf32>
    %86 = arith.divf %84, %85 : vector<16x1xf32>
    %87 = arith.mulf %82, %82 : vector<16x32xf32>
    %cst_30 = arith.constant dense<0.000000e+00> : vector<16xf32>
    %88 = vector.multi_reduction <add>, %87, %cst_30 [1] : vector<16x32xf32> to vector<16xf32>
    %89 = vector.shape_cast %88 : vector<16xf32> to vector<16x1xf32>
    %cst_31 = arith.constant 3.200000e+01 : f32
    %90 = vector.broadcast %cst_31 : f32 to vector<16x1xf32>
    %91 = arith.divf %89, %90 : vector<16x1xf32>
    %92 = arith.mulf %86, %86 : vector<16x1xf32>
    %93 = arith.subf %91, %92 : vector<16x1xf32>
    %cst_32 = arith.constant 0.000000e+00 : f32
    %94 = vector.broadcast %cst_32 : f32 to vector<16x1xf32>
    %95 = arith.maximumf %93, %94 : vector<16x1xf32>
    %96 = vector.broadcast %86 : vector<16x1xf32> to vector<16x32xf32>
    %97 = arith.subf %82, %96 : vector<16x32xf32>
    %cst_33 = arith.constant 9.99999974E-6 : f32
    %98 = vector.broadcast %cst_33 : f32 to vector<16x1xf32>
    %99 = arith.addf %95, %98 : vector<16x1xf32>
    %100 = math.rsqrt %99 : vector<16x1xf32>
    %101 = vector.broadcast %100 : vector<16x1xf32> to vector<16x32xf32>
    %102 = arith.mulf %97, %101 : vector<16x32xf32>
    %103 = vector.broadcast %45 : vector<1x32xf32> to vector<16x32xf32>
    %104 = arith.mulf %102, %103 : vector<16x32xf32>
    %105 = vector.broadcast %46 : vector<1x32xf32> to vector<16x32xf32>
    %106 = arith.addf %104, %105 : vector<16x32xf32>
    %107 = arith.addf %40, %106 : vector<16x32xf32>
    %108 = vector.extract_strided_slice %1 {offsets = [9, 0], sizes = [1, 32], strides = [1, 1]} : vector<15x32xf32> to vector<1x32xf32>
    %109 = vector.extract_strided_slice %1 {offsets = [10, 0], sizes = [1, 32], strides = [1, 1]} : vector<15x32xf32> to vector<1x32xf32>
    %110 = vector.extract_strided_slice %1 {offsets = [11, 0], sizes = [1, 32], strides = [1, 1]} : vector<15x32xf32> to vector<1x32xf32>
    %111 = vector.extract_strided_slice %1 {offsets = [12, 0], sizes = [1, 32], strides = [1, 1]} : vector<15x32xf32> to vector<1x32xf32>
    %112 = vector.extract_strided_slice %1 {offsets = [13, 0], sizes = [1, 32], strides = [1, 1]} : vector<15x32xf32> to vector<1x32xf32>
    %113 = vector.extract_strided_slice %1 {offsets = [14, 0], sizes = [1, 32], strides = [1, 1]} : vector<15x32xf32> to vector<1x32xf32>
    %c2 = arith.constant 2 : index
    %c0_34 = arith.constant 0 : index
    %c0_35 = arith.constant 0 : index
    %114 = vector.load %arg3[%c2, %c0_34, %c0_35] : memref<4x32x32xf32, #tpu.memory_space<vmem>>, vector<1x32x32xf32>
    %115 = vector.shape_cast %114 : vector<1x32x32xf32> to vector<32x32xf32>
    %cst_36 = arith.constant dense<0.000000e+00> : vector<16x32xf32>
    %116 = tpu.matmul %107, %115, %cst_36 {dimension_numbers = #tpu.dot_dimension_numbers<[1], [0], [0], [1], [0, 0, 1, 1], [], []>} : vector<16x32xf32>, vector<32x32xf32>, vector<16x32xf32> -> vector<16x32xf32>
    %117 = vector.broadcast %108 : vector<1x32xf32> to vector<16x32xf32>
    %118 = arith.addf %116, %117 : vector<16x32xf32>
    %cst_37 = arith.constant dense<0.000000e+00> : vector<16xf32>
    %119 = vector.multi_reduction <add>, %118, %cst_37 [1] : vector<16x32xf32> to vector<16xf32>
    %120 = vector.shape_cast %119 : vector<16xf32> to vector<16x1xf32>
    %cst_38 = arith.constant 3.200000e+01 : f32
    %121 = vector.broadcast %cst_38 : f32 to vector<16x1xf32>
    %122 = arith.divf %120, %121 : vector<16x1xf32>
    %123 = arith.mulf %118, %118 : vector<16x32xf32>
    %cst_39 = arith.constant dense<0.000000e+00> : vector<16xf32>
    %124 = vector.multi_reduction <add>, %123, %cst_39 [1] : vector<16x32xf32> to vector<16xf32>
    %125 = vector.shape_cast %124 : vector<16xf32> to vector<16x1xf32>
    %cst_40 = arith.constant 3.200000e+01 : f32
    %126 = vector.broadcast %cst_40 : f32 to vector<16x1xf32>
    %127 = arith.divf %125, %126 : vector<16x1xf32>
    %128 = arith.mulf %122, %122 : vector<16x1xf32>
    %129 = arith.subf %127, %128 : vector<16x1xf32>
    %cst_41 = arith.constant 0.000000e+00 : f32
    %130 = vector.broadcast %cst_41 : f32 to vector<16x1xf32>
    %131 = arith.maximumf %129, %130 : vector<16x1xf32>
    %132 = vector.broadcast %122 : vector<16x1xf32> to vector<16x32xf32>
    %133 = arith.subf %118, %132 : vector<16x32xf32>
    %cst_42 = arith.constant 9.99999974E-6 : f32
    %134 = vector.broadcast %cst_42 : f32 to vector<16x1xf32>
    %135 = arith.addf %131, %134 : vector<16x1xf32>
    %136 = math.rsqrt %135 : vector<16x1xf32>
    %137 = vector.broadcast %136 : vector<16x1xf32> to vector<16x32xf32>
    %138 = arith.mulf %133, %137 : vector<16x32xf32>
    %139 = vector.broadcast %109 : vector<1x32xf32> to vector<16x32xf32>
    %140 = arith.mulf %138, %139 : vector<16x32xf32>
    %141 = vector.broadcast %110 : vector<1x32xf32> to vector<16x32xf32>
    %142 = arith.addf %140, %141 : vector<16x32xf32>
    %cst_43 = arith.constant 0.000000e+00 : f32
    %143 = vector.broadcast %cst_43 : f32 to vector<16x32xf32>
    %144 = arith.maximumf %142, %143 : vector<16x32xf32>
    %c3 = arith.constant 3 : index
    %c0_44 = arith.constant 0 : index
    %c0_45 = arith.constant 0 : index
    %145 = vector.load %arg3[%c3, %c0_44, %c0_45] : memref<4x32x32xf32, #tpu.memory_space<vmem>>, vector<1x32x32xf32>
    %146 = vector.shape_cast %145 : vector<1x32x32xf32> to vector<32x32xf32>
    %cst_46 = arith.constant dense<0.000000e+00> : vector<16x32xf32>
    %147 = tpu.matmul %144, %146, %cst_46 {dimension_numbers = #tpu.dot_dimension_numbers<[1], [0], [0], [1], [0, 0, 1, 1], [], []>} : vector<16x32xf32>, vector<32x32xf32>, vector<16x32xf32> -> vector<16x32xf32>
    %148 = vector.broadcast %111 : vector<1x32xf32> to vector<16x32xf32>
    %149 = arith.addf %147, %148 : vector<16x32xf32>
    %cst_47 = arith.constant dense<0.000000e+00> : vector<16xf32>
    %150 = vector.multi_reduction <add>, %149, %cst_47 [1] : vector<16x32xf32> to vector<16xf32>
    %151 = vector.shape_cast %150 : vector<16xf32> to vector<16x1xf32>
    %cst_48 = arith.constant 3.200000e+01 : f32
    %152 = vector.broadcast %cst_48 : f32 to vector<16x1xf32>
    %153 = arith.divf %151, %152 : vector<16x1xf32>
    %154 = arith.mulf %149, %149 : vector<16x32xf32>
    %cst_49 = arith.constant dense<0.000000e+00> : vector<16xf32>
    %155 = vector.multi_reduction <add>, %154, %cst_49 [1] : vector<16x32xf32> to vector<16xf32>
    %156 = vector.shape_cast %155 : vector<16xf32> to vector<16x1xf32>
    %cst_50 = arith.constant 3.200000e+01 : f32
    %157 = vector.broadcast %cst_50 : f32 to vector<16x1xf32>
    %158 = arith.divf %156, %157 : vector<16x1xf32>
    %159 = arith.mulf %153, %153 : vector<16x1xf32>
    %160 = arith.subf %158, %159 : vector<16x1xf32>
    %cst_51 = arith.constant 0.000000e+00 : f32
    %161 = vector.broadcast %cst_51 : f32 to vector<16x1xf32>
    %162 = arith.maximumf %160, %161 : vector<16x1xf32>
    %163 = vector.broadcast %153 : vector<16x1xf32> to vector<16x32xf32>
    %164 = arith.subf %149, %163 : vector<16x32xf32>
    %cst_52 = arith.constant 9.99999974E-6 : f32
    %165 = vector.broadcast %cst_52 : f32 to vector<16x1xf32>
    %166 = arith.addf %162, %165 : vector<16x1xf32>
    %167 = math.rsqrt %166 : vector<16x1xf32>
    %168 = vector.broadcast %167 : vector<16x1xf32> to vector<16x32xf32>
    %169 = arith.mulf %164, %168 : vector<16x32xf32>
    %170 = vector.broadcast %112 : vector<1x32xf32> to vector<16x32xf32>
    %171 = arith.mulf %169, %170 : vector<16x32xf32>
    %172 = vector.broadcast %113 : vector<1x32xf32> to vector<16x32xf32>
    %173 = arith.addf %171, %172 : vector<16x32xf32>
    %174 = arith.addf %107, %173 : vector<16x32xf32>
    %c0_53 = arith.constant 0 : index
    %c0_54 = arith.constant 0 : index
    %c0_55 = arith.constant 0 : index
    %175 = vector.load %arg4[%c0_53, %c0_54, %c0_55] : memref<2x32x16xf32, #tpu.memory_space<vmem>>, vector<1x32x16xf32>
    %176 = vector.shape_cast %175 : vector<1x32x16xf32> to vector<32x16xf32>
    %cst_56 = arith.constant dense<0.000000e+00> : vector<16x16xf32>
    %177 = tpu.matmul %174, %176, %cst_56 {dimension_numbers = #tpu.dot_dimension_numbers<[1], [0], [0], [1], [0, 0, 1, 1], [], []>} : vector<16x32xf32>, vector<32x16xf32>, vector<16x16xf32> -> vector<16x16xf32>
    %178 = vector.broadcast %6 : vector<1x16xf32> to vector<16x16xf32>
    %179 = arith.addf %177, %178 : vector<16x16xf32>
    %180 = math.tanh %179 : vector<16x16xf32>
    %181 = vector.broadcast %10 : vector<1x16xf32> to vector<16x16xf32>
    %182 = arith.mulf %180, %181 : vector<16x16xf32>
    %cst_57 = arith.constant dense<0.000000e+00> : vector<16xf32>
    %183 = vector.multi_reduction <add>, %182, %cst_57 [1] : vector<16x16xf32> to vector<16xf32>
    %184 = vector.shape_cast %183 : vector<16xf32> to vector<16x1xf32>
    %185 = tpu.iota {dimensions = array<i32: 0>} : vector<16x2xi32>
    %c3_i32 = arith.constant 3 : i32
    %186 = vector.broadcast %c3_i32 : i32 to vector<16x2xi32>
    %187 = arith.shrsi %185, %186 : vector<16x2xi32>
    %188 = tpu.iota {dimensions = array<i32: 1>} : vector<16x2xi32>
    %189 = arith.cmpi eq, %187, %188 : vector<16x2xi32>
    %cst_58 = arith.constant 0xFF800000 : f32
    %190 = vector.shape_cast %184 : vector<16x1xf32> to vector<16x1xf32>
    %191 = vector.broadcast %190 : vector<16x1xf32> to vector<16x2xf32>
    %192 = vector.broadcast %cst_58 : f32 to vector<16x2xf32>
    %193 = arith.select %189, %191, %192 : vector<16x2xi1>, vector<16x2xf32>
    %cst_59 = arith.constant dense<0xFF800000> : vector<2xf32>
    %194 = vector.multi_reduction <maximumf>, %193, %cst_59 [0] : vector<16x2xf32> to vector<2xf32>
    %195 = vector.shape_cast %194 : vector<2xf32> to vector<1x2xf32>
    %196 = vector.broadcast %195 : vector<1x2xf32> to vector<16x2xf32>
    %197 = arith.subf %193, %196 : vector<16x2xf32>
    %198 = math.exp %197 : vector<16x2xf32>
    %cst_60 = arith.constant dense<0.000000e+00> : vector<2xf32>
    %199 = vector.multi_reduction <add>, %198, %cst_60 [0] : vector<16x2xf32> to vector<2xf32>
    %200 = vector.shape_cast %199 : vector<2xf32> to vector<1x2xf32>
    %cst_61 = arith.constant 0.000000e+00 : f32
    %201 = vector.shape_cast %195 : vector<1x2xf32> to vector<1x2xf32>
    %202 = vector.broadcast %201 : vector<1x2xf32> to vector<16x2xf32>
    %203 = vector.broadcast %cst_61 : f32 to vector<16x2xf32>
    %204 = arith.select %189, %202, %203 : vector<16x2xi1>, vector<16x2xf32>
    %cst_62 = arith.constant dense<0.000000e+00> : vector<16xf32>
    %205 = vector.multi_reduction <add>, %204, %cst_62 [1] : vector<16x2xf32> to vector<16xf32>
    %206 = vector.shape_cast %205 : vector<16xf32> to vector<16x1xf32>
    %cst_63 = arith.constant 0.000000e+00 : f32
    %207 = vector.shape_cast %200 : vector<1x2xf32> to vector<1x2xf32>
    %208 = vector.broadcast %207 : vector<1x2xf32> to vector<16x2xf32>
    %209 = vector.broadcast %cst_63 : f32 to vector<16x2xf32>
    %210 = arith.select %189, %208, %209 : vector<16x2xi1>, vector<16x2xf32>
    %cst_64 = arith.constant dense<0.000000e+00> : vector<16xf32>
    %211 = vector.multi_reduction <add>, %210, %cst_64 [1] : vector<16x2xf32> to vector<16xf32>
    %212 = vector.shape_cast %211 : vector<16xf32> to vector<16x1xf32>
    %213 = arith.subf %184, %206 : vector<16x1xf32>
    %214 = math.exp %213 : vector<16x1xf32>
    %215 = arith.divf %214, %212 : vector<16x1xf32>
    %216 = vector.broadcast %215 : vector<16x1xf32> to vector<16x32xf32>
    %217 = arith.mulf %174, %216 : vector<16x32xf32>
    %c1_65 = arith.constant 1 : index
    %c0_66 = arith.constant 0 : index
    %c0_67 = arith.constant 0 : index
    %218 = vector.load %arg4[%c1_65, %c0_66, %c0_67] : memref<2x32x16xf32, #tpu.memory_space<vmem>>, vector<1x32x16xf32>
    %219 = vector.shape_cast %218 : vector<1x32x16xf32> to vector<32x16xf32>
    %cst_68 = arith.constant dense<0.000000e+00> : vector<16x16xf32>
    %220 = tpu.matmul %217, %219, %cst_68 {dimension_numbers = #tpu.dot_dimension_numbers<[1], [0], [0], [1], [0, 0, 1, 1], [], []>} : vector<16x32xf32>, vector<32x16xf32>, vector<16x16xf32> -> vector<16x16xf32>
    %221 = vector.broadcast %7 : vector<1x16xf32> to vector<16x16xf32>
    %222 = arith.addf %220, %221 : vector<16x16xf32>
    %cst_69 = arith.constant 0.000000e+00 : f32
    %223 = vector.broadcast %cst_69 : f32 to vector<16x16xf32>
    %224 = arith.maximumf %222, %223 : vector<16x16xf32>
    %cst_70 = arith.constant dense<0.000000e+00> : vector<16xf32>
    %225 = vector.multi_reduction <add>, %224, %cst_70 [1] : vector<16x16xf32> to vector<16xf32>
    %226 = vector.shape_cast %225 : vector<16xf32> to vector<16x1xf32>
    %cst_71 = arith.constant 1.600000e+01 : f32
    %227 = vector.broadcast %cst_71 : f32 to vector<16x1xf32>
    %228 = arith.divf %226, %227 : vector<16x1xf32>
    %229 = arith.mulf %224, %224 : vector<16x16xf32>
    %cst_72 = arith.constant dense<0.000000e+00> : vector<16xf32>
    %230 = vector.multi_reduction <add>, %229, %cst_72 [1] : vector<16x16xf32> to vector<16xf32>
    %231 = vector.shape_cast %230 : vector<16xf32> to vector<16x1xf32>
    %cst_73 = arith.constant 1.600000e+01 : f32
    %232 = vector.broadcast %cst_73 : f32 to vector<16x1xf32>
    %233 = arith.divf %231, %232 : vector<16x1xf32>
    %234 = arith.mulf %228, %228 : vector<16x1xf32>
    %235 = arith.subf %233, %234 : vector<16x1xf32>
    %cst_74 = arith.constant 0.000000e+00 : f32
    %236 = vector.broadcast %cst_74 : f32 to vector<16x1xf32>
    %237 = arith.maximumf %235, %236 : vector<16x1xf32>
    %238 = vector.broadcast %228 : vector<16x1xf32> to vector<16x16xf32>
    %239 = arith.subf %224, %238 : vector<16x16xf32>
    %cst_75 = arith.constant 9.99999974E-6 : f32
    %240 = vector.broadcast %cst_75 : f32 to vector<16x1xf32>
    %241 = arith.addf %237, %240 : vector<16x1xf32>
    %242 = math.rsqrt %241 : vector<16x1xf32>
    %243 = vector.broadcast %242 : vector<16x1xf32> to vector<16x16xf32>
    %244 = arith.mulf %239, %243 : vector<16x16xf32>
    %245 = vector.broadcast %8 : vector<1x16xf32> to vector<16x16xf32>
    %246 = arith.mulf %244, %245 : vector<16x16xf32>
    %247 = vector.broadcast %9 : vector<1x16xf32> to vector<16x16xf32>
    %248 = arith.addf %246, %247 : vector<16x16xf32>
    %c0_76 = arith.constant 0 : index
    %c0_77 = arith.constant 0 : index
    %249 = vector.load %arg7[%c0_76, %c0_77] : memref<16x128xf32, #tpu.memory_space<vmem>>, vector<16x128xf32>
    %c0_78 = arith.constant 0 : index
    %c0_79 = arith.constant 0 : index
    %250 = vector.load %arg8[%c0_78, %c0_79] : memref<1x128xf32, #tpu.memory_space<vmem>>, vector<1x128xf32>
    %cst_80 = arith.constant dense<0.000000e+00> : vector<16x128xf32>
    %251 = tpu.matmul %248, %249, %cst_80 {dimension_numbers = #tpu.dot_dimension_numbers<[1], [0], [0], [1], [0, 0, 1, 1], [], []>} : vector<16x16xf32>, vector<16x128xf32>, vector<16x128xf32> -> vector<16x128xf32>
    %252 = vector.broadcast %250 : vector<1x128xf32> to vector<16x128xf32>
    %253 = arith.addf %251, %252 : vector<16x128xf32>
    %c0_81 = arith.constant 0 : index
    %c0_82 = arith.constant 0 : index
    %254 = vector.load %arg9[%c0_81, %c0_82] : memref<16x128xf32, #tpu.memory_space<vmem>>, vector<16x128xf32>
    tpu.vector_store %arg9[%c0_81, %c0_82], %253 {strides = array<i32>} : memref<16x128xf32, #tpu.memory_space<vmem>>, vector<16x128xf32>,
    return
  }
  func.func @transform_0(%arg0: i32) -> (i32, i32) {
    %c0_i32 = arith.constant 0 : i32
    %c0_i32_0 = arith.constant 0 : i32
    return %arg0, %c0_i32 : i32, i32
  }
  func.func @transform_1(%arg0: i32) -> (i32, i32) {
    %c0_i32 = arith.constant 0 : i32
    %c0_i32_0 = arith.constant 0 : i32
    %c0_i32_1 = arith.constant 0 : i32
    return %c0_i32, %c0_i32_0 : i32, i32
  }
  func.func @transform_2(%arg0: i32) -> (i32, i32, i32) {
    %c0_i32 = arith.constant 0 : i32
    %c0_i32_0 = arith.constant 0 : i32
    %c0_i32_1 = arith.constant 0 : i32
    %c0_i32_2 = arith.constant 0 : i32
    return %c0_i32, %c0_i32_0, %c0_i32_1 : i32, i32, i32
  }
  func.func @transform_3(%arg0: i32) -> (i32, i32, i32) {
    %c0_i32 = arith.constant 0 : i32
    %c0_i32_0 = arith.constant 0 : i32
    %c0_i32_1 = arith.constant 0 : i32
    %c0_i32_2 = arith.constant 0 : i32
    return %c0_i32, %c0_i32_0, %c0_i32_1 : i32, i32, i32
  }
  func.func @transform_4(%arg0: i32) -> (i32, i32) {
    %c0_i32 = arith.constant 0 : i32
    %c0_i32_0 = arith.constant 0 : i32
    %c0_i32_1 = arith.constant 0 : i32
    return %c0_i32, %c0_i32_0 : i32, i32
  }
  func.func @transform_5(%arg0: i32) -> (i32, i32) {
    %c0_i32 = arith.constant 0 : i32
    %c0_i32_0 = arith.constant 0 : i32
    %c0_i32_1 = arith.constant 0 : i32
    return %c0_i32, %c0_i32_0 : i32, i32
  }
  func.func @transform_6(%arg0: i32) -> (i32, i32) {
    %c0_i32 = arith.constant 0 : i32
    %c0_i32_0 = arith.constant 0 : i32
    %c0_i32_1 = arith.constant 0 : i32
    return %c0_i32, %c0_i32_0 : i32, i32
  }
  func.func @transform_7(%arg0: i32) -> (i32, i32) {
    %c0_i32 = arith.constant 0 : i32
    %c0_i32_0 = arith.constant 0 : i32
    %c0_i32_1 = arith.constant 0 : i32
    return %c0_i32, %c0_i32_0 : i32, i32
  }
  func.func @transform_8(%arg0: i32) -> (i32, i32) {
    %c0_i32 = arith.constant 0 : i32
    %c0_i32_0 = arith.constant 0 : i32
    return %arg0, %c0_i32 : i32, i32
  }
}

</mosaic_0001>

<llo_original>
// kernel: tpu_custom_call.1
$region0: #{tpu_custom_call.1}
  #allocation0 [shape = 'u32[]', space=smem, size = 0x4, offset = 0x4, fixed_abs, tag = 'smem constant byte address 0x4 - core index']
  #allocation1 [shape = 'u32[144,128]{1,0:T(1,128)}', space=vmem, size = 0x12000, scoped, tag = 'internal scratch']
  %s0 = inlined_call_operand.vmem [shape: f32[32,16], index: 0, kind: input, shape index: {}]
  %s1 = inlined_call_operand.vmem [shape: f32[16,32], index: 1, kind: input, shape index: {}]
  %s2 = inlined_call_operand.vmem [shape: f32[4,32,32], index: 2, kind: input, shape index: {}]
  %s3 = inlined_call_operand.vmem [shape: f32[2,32,16], index: 3, kind: input, shape index: {}]
  %s4 = inlined_call_operand.hbm [shape: f32[15,32], index: 4, kind: input, shape index: {}]
  %s5 = inlined_call_operand.vmem [shape: f32[5,16], index: 5, kind: input, shape index: {}]
  %s6 = inlined_call_operand.hbm [shape: f32[16,128], index: 6, kind: input, shape index: {}]
  %s7 = inlined_call_operand.vmem [shape: f32[1,128], index: 7, kind: input, shape index: {}]
  %s8 = inlined_call_operand.hbm [shape: f32[32,128], index: 8, kind: output, shape index: {}]
  %s9 = sld [smem:[#allocation0]]
  $region73: #{tpu_custom_call.1} parent=0
    _
  %s11 = ssub.s32 1, %s9
  %s12 = scalar_select 0, %s11, %s9
  $region1: #{tpu_custom_call.1} parent=0
    #allocation2 [shape = 'u8[8192]{0}', space=vmem, size = 0x2000, scoped, tag = 'input window, operand 4, single buffered']
    #allocation3 [shape = 's32[2]{0}', space=sflag, size = 0x8, scoped, tag = 'scoped memory for tpu_custom_call.1']
    #allocation4 [shape = 's32[2]{0}', space=sflag, size = 0x8, scoped, tag = 'scoped memory for tpu_custom_call.1']
    #allocation5 [shape = 'u8[8192]{0}', space=vmem, size = 0x2000, scoped, tag = 'input window, operand 6, single buffered']
    #allocation6 [shape = 's32[1]{0}', space=sflag, size = 0x4, scoped, tag = 'scoped memory for tpu_custom_call.1']
    #allocation7 [shape = 'u8[16384]{0}', space=vmem, size = 0x4000, scoped, tag = 'output window, operand 0']
    %13 = vsyncpa [#allocation3], 0
    %14 = vsyncpa [#allocation6], 0
    %15 = vsyncpa [#allocation4], 0
    %s16 = scalar_lea.sflag [#allocation4], 1
    %17 = vsyncpa %s16, 0
    loop: start=0, step=1, limit=4
    $region2: #{tpu_custom_call.1} parent=1 // loop_pre_header
      _
    $region3: #{tpu_custom_call.1} parent=1 // loop_header
      %s19 = sphi 0, %s23
      %p20 = scmp.ge.s32.totalorder %s19, 4
      %s29 = sphi 0, %s31
      %s32 = sphi 0, %s29
      %s33 = sphi 0, %s32
      %s49 = sphi 0, %s33
      %s53 = sphi 0, %s53
      %s55 = sphi 0, %s53
      %s56 = sphi 0, %s55
      %s70 = sphi 0, %s56
      %s74 = sphi 0, %s74
      %s76 = sphi 0, %s74
      %s77 = sphi 0, %s76
      %s91 = sphi 0, %s77
      %s95 = sphi 0, %s95
      %s97 = sphi 0, %s95
      %s98 = sphi 0, %s97
      %s112 = sphi 0, %s98
      %s116 = sphi 0, %s116
      %s118 = sphi 0, %s116
      %s119 = sphi 0, %s118
      %s133 = sphi 0, %s119
      %s137 = sphi 0, %s137
      %s139 = sphi 0, %s137
      %s140 = sphi 0, %s139
      %s154 = sphi 0, %s140
      %s158 = sphi 0, %s158
      %s160 = sphi 0, %s158
      %s161 = sphi 0, %s160
      %s175 = sphi 0, %s161
      %s179 = sphi 0, %s179
      %s181 = sphi 0, %s179
      %s182 = sphi 0, %s181
      %s196 = sphi 0, %s182
      %s202 = sphi 0, %s204
      %s205 = sphi 0, %s202
      %s206 = sphi 0, %s205
      %s222 = sphi 0, %s206
    $region4: #{tpu_custom_call.1} parent=1 // loop_header_branch
      %22 = sbr.rel (%p20) target = $region8
    $region5: #{tpu_custom_call.1} parent=1 // loop_body
      %s24 = ssub.s32 %s19, 1
      %s25 = ssub.s32 %s19, 2
      %s26 = sadd.s32 %s19, 1
      %s27 = ssub.s32 %s19, %s26
      %p28 = scmp.eq.s32.totalorder %s27, 0
      %s30 = sadd.s32 %s29, 1
      %s31 = scalar_select %p28, %s29, %s30
      %p34 = pneg %p28
      %p35 = scmp.eq.s32.totalorder %s19, 1
      %p36 = por %p34, %p35
      %p37 = scmp.ne.s32.totalorder %s29, %s32
      %p38 = scmp.eq.s32.totalorder %s19, 0
      %p39 = por %p37, %p38
      %p40 = scmp.ne.s32.totalorder %s29, %s32
      %p41 = scmp.eq.s32.totalorder %s24, 1
      %p42 = por %p40, %p41
      %p43 = scmp.ne.s32.totalorder %s32, %s33
      %p44 = scmp.eq.s32.totalorder %s24, 0
      %p45 = por %p43, %p44
      %p46 = scmp.ne.s32.totalorder %s32, %s33
      %p47 = scmp.eq.s32.totalorder %s25, 1
      %p48 = por %p46, %p47
      %p50 = scmp.ne.s32.totalorder %s33, %s49
      %p51 = scmp.eq.s32.totalorder %s25, 0
      %p52 = por %p50, %p51
      %s54 = sadd.s32 %s53, 1
      %p57 = scmp.eq.s32.totalorder %s19, 1
      %p58 = scmp.ne.s32.totalorder %s53, %s55
      %p59 = scmp.eq.s32.totalorder %s19, 0
      %p60 = por %p58, %p59
      %p61 = scmp.ne.s32.totalorder %s53, %s55
      %p62 = scmp.eq.s32.totalorder %s24, 1
      %p63 = por %p61, %p62
      %p64 = scmp.ne.s32.totalorder %s55, %s56
      %p65 = scmp.eq.s32.totalorder %s24, 0
      %p66 = por %p64, %p65
      %p67 = scmp.ne.s32.totalorder %s55, %s56
      %p68 = scmp.eq.s32.totalorder %s25, 1
      %p69 = por %p67, %p68
      %p71 = scmp.ne.s32.totalorder %s56, %s70
      %p72 = scmp.eq.s32.totalorder %s25, 0
      %p73 = por %p71, %p72
      %s75 = sadd.s32 %s74, 1
      %p78 = scmp.eq.s32.totalorder %s19, 1
      %p79 = scmp.ne.s32.totalorder %s74, %s76
      %p80 = scmp.eq.s32.totalorder %s19, 0
      %p81 = por %p79, %p80
      %p82 = scmp.ne.s32.totalorder %s74, %s76
      %p83 = scmp.eq.s32.totalorder %s24, 1
      %p84 = por %p82, %p83
      %p85 = scmp.ne.s32.totalorder %s76, %s77
      %p86 = scmp.eq.s32.totalorder %s24, 0
      %p87 = por %p85, %p86
      %p88 = scmp.ne.s32.totalorder %s76, %s77
      %p89 = scmp.eq.s32.totalorder %s25, 1
      %p90 = por %p88, %p89
      %p92 = scmp.ne.s32.totalorder %s77, %s91
      %p93 = scmp.eq.s32.totalorder %s25, 0
      %p94 = por %p92, %p93
      %s96 = sadd.s32 %s95, 1
      %p99 = scmp.eq.s32.totalorder %s19, 1
      %p100 = scmp.ne.s32.totalorder %s95, %s97
      %p101 = scmp.eq.s32.totalorder %s19, 0
      %p102 = por %p100, %p101
      %p103 = scmp.ne.s32.totalorder %s95, %s97
      %p104 = scmp.eq.s32.totalorder %s24, 1
      %p105 = por %p103, %p104
      %p106 = scmp.ne.s32.totalorder %s97, %s98
      %p107 = scmp.eq.s32.totalorder %s24, 0
      %p108 = por %p106, %p107
      %p109 = scmp.ne.s32.totalorder %s97, %s98
      %p110 = scmp.eq.s32.totalorder %s25, 1
      %p111 = por %p109, %p110
      %p113 = scmp.ne.s32.totalorder %s98, %s112
      %p114 = scmp.eq.s32.totalorder %s25, 0
      %p115 = por %p113, %p114
      %s117 = sadd.s32 %s116, 1
      %p120 = scmp.eq.s32.totalorder %s19, 1
      %p121 = scmp.ne.s32.totalorder %s116, %s118
      %p122 = scmp.eq.s32.totalorder %s19, 0
      %p123 = por %p121, %p122
      %p124 = scmp.ne.s32.totalorder %s116, %s118
      %p125 = scmp.eq.s32.totalorder %s24, 1
      %p126 = por %p124, %p125
      %p127 = scmp.ne.s32.totalorder %s118, %s119
      %p128 = scmp.eq.s32.totalorder %s24, 0
      %p129 = por %p127, %p128
      %p130 = scmp.ne.s32.totalorder %s118, %s119
      %p131 = scmp.eq.s32.totalorder %s25, 1
      %p132 = por %p130, %p131
      %p134 = scmp.ne.s32.totalorder %s119, %s133
      %p135 = scmp.eq.s32.totalorder %s25, 0
      %p136 = por %p134, %p135
      %s138 = sadd.s32 %s137, 1
      %p141 = scmp.eq.s32.totalorder %s19, 1
      %p142 = scmp.ne.s32.totalorder %s137, %s139
      %p143 = scmp.eq.s32.totalorder %s19, 0
      %p144 = por %p142, %p143
      %p145 = scmp.ne.s32.totalorder %s137, %s139
      %p146 = scmp.eq.s32.totalorder %s24, 1
      %p147 = por %p145, %p146
      %p148 = scmp.ne.s32.totalorder %s139, %s140
      %p149 = scmp.eq.s32.totalorder %s24, 0
      %p150 = por %p148, %p149
      %p151 = scmp.ne.s32.totalorder %s139, %s140
      %p152 = scmp.eq.s32.totalorder %s25, 1
      %p153 = por %p151, %p152
      %p155 = scmp.ne.s32.totalorder %s140, %s154
      %p156 = scmp.eq.s32.totalorder %s25, 0
      %p157 = por %p155, %p156
      %s159 = sadd.s32 %s158, 1
      %p162 = scmp.eq.s32.totalorder %s19, 1
      %p163 = scmp.ne.s32.totalorder %s158, %s160
      %p164 = scmp.eq.s32.totalorder %s19, 0
      %p165 = por %p163, %p164
      %p166 = scmp.ne.s32.totalorder %s158, %s160
      %p167 = scmp.eq.s32.totalorder %s24, 1
      %p168 = por %p166, %p167
      %p169 = scmp.ne.s32.totalorder %s160, %s161
      %p170 = scmp.eq.s32.totalorder %s24, 0
      %p171 = por %p169, %p170
      %p172 = scmp.ne.s32.totalorder %s160, %s161
      %p173 = scmp.eq.s32.totalorder %s25, 1
      %p174 = por %p172, %p173
      %p176 = scmp.ne.s32.totalorder %s161, %s175
      %p177 = scmp.eq.s32.totalorder %s25, 0
      %p178 = por %p176, %p177
      %s180 = sadd.s32 %s179, 1
      %p183 = scmp.eq.s32.totalorder %s19, 1
      %p184 = scmp.ne.s32.totalorder %s179, %s181
      %p185 = scmp.eq.s32.totalorder %s19, 0
      %p186 = por %p184, %p185
      %p187 = scmp.ne.s32.totalorder %s179, %s181
      %p188 = scmp.eq.s32.totalorder %s24, 1
      %p189 = por %p187, %p188
      %p190 = scmp.ne.s32.totalorder %s181, %s182
      %p191 = scmp.eq.s32.totalorder %s24, 0
      %p192 = por %p190, %p191
      %p193 = scmp.ne.s32.totalorder %s181, %s182
      %p194 = scmp.eq.s32.totalorder %s25, 1
      %p195 = por %p193, %p194
      %p197 = scmp.ne.s32.totalorder %s182, %s196
      %p198 = scmp.eq.s32.totalorder %s25, 0
      %p199 = por %p197, %p198
      %s200 = ssub.s32 %s19, %s26
      %p201 = scmp.eq.s32.totalorder %s200, 0
      %s203 = sadd.s32 %s202, 1
      %s204 = scalar_select %p201, %s202, %s203
      %p207 = pneg %p201
      %p208 = scmp.eq.s32.totalorder %s19, 1
      %p209 = por %p207, %p208
      %p210 = scmp.ne.s32.totalorder %s202, %s205
      %p211 = scmp.eq.s32.totalorder %s19, 0
      %p212 = por %p210, %p211
      %p213 = scmp.ne.s32.totalorder %s202, %s205
      %p214 = scmp.eq.s32.totalorder %s24, 1
      %p215 = por %p213, %p214
      %p216 = scmp.ne.s32.totalorder %s205, %s206
      %p217 = scmp.eq.s32.totalorder %s24, 0
      %p218 = por %p216, %p217
      %p219 = scmp.ne.s32.totalorder %s205, %s206
      %p220 = scmp.eq.s32.totalorder %s25, 1
      %p221 = por %p219, %p220
      %p223 = scmp.ne.s32.totalorder %s206, %s222
      %p224 = scmp.eq.s32.totalorder %s25, 0
      %p225 = por %p223, %p224
      %p226 = scmp.le.s32.totalorder 1, %s19
      %p227 = scmp.lt.s32.totalorder %s19, 3
      %p228 = pnand %p226, %p227
      %p229 = pneg %p228
      // Predicated region
      $region9: #{tpu_custom_call.1} parent=5 // pred_check
        _
      $region10: #{tpu_custom_call.1} parent=5 // pred_check_branch
        %231 = sbr.rel (%p228) target = $region12
      $region11: #{tpu_custom_call.1} parent=5 // pred_region
        %s232 = ssub.s32 %s19, 1
        // Predicated region
        $region13: #{tpu_custom_call.1} parent=11 // pred_check
          %p233 = pneg %p66
        $region14: #{tpu_custom_call.1} parent=11 // pred_check_branch
          %235 = sbr.rel (%p233) target = $region16
        $region15: #{tpu_custom_call.1} parent=11 // pred_region
          _
        $region16: #{tpu_custom_call.1} parent=11 // pred_fallthru
          _
        // Predicated region
        $region17: #{tpu_custom_call.1} parent=11 // pred_check
          %p236 = pneg %p87
        $region18: #{tpu_custom_call.1} parent=11 // pred_check_branch
          %238 = sbr.rel (%p236) target = $region20
        $region19: #{tpu_custom_call.1} parent=11 // pred_region
          _
        $region20: #{tpu_custom_call.1} parent=11 // pred_fallthru
          _
        // Predicated region
        $region21: #{tpu_custom_call.1} parent=11 // pred_check
          %p239 = pneg %p108
        $region22: #{tpu_custom_call.1} parent=11 // pred_check_branch
          %241 = sbr.rel (%p239) target = $region24
        $region23: #{tpu_custom_call.1} parent=11 // pred_region
          _
        $region24: #{tpu_custom_call.1} parent=11 // pred_fallthru
          _
        // Predicated region
        $region25: #{tpu_custom_call.1} parent=11 // pred_check
          %p242 = pneg %p129
        $region26: #{tpu_custom_call.1} parent=11 // pred_check_branch
          %244 = sbr.rel (%p242) target = $region28
        $region27: #{tpu_custom_call.1} parent=11 // pred_region
          %s246 = ssub.s32 256, 256
          %247 = vsyncadd [#allocation3], %s246
          %s248 = sshll.u32 [#allocation2], 4
          %s249 = int_to_ptr.vmem [resolvable:$true] %s248
          %254 = dma.hbm_to_vmem [thread:$0]  %s4, 256, %s249, [#allocation3], 128, 128, 8
        $region28: #{tpu_custom_call.1} parent=11 // pred_fallthru
          _
        // Predicated region
        $region29: #{tpu_custom_call.1} parent=11 // pred_check
          %p255 = pneg %p150
        $region30: #{tpu_custom_call.1} parent=11 // pred_check_branch
          %257 = sbr.rel (%p255) target = $region32
        $region31: #{tpu_custom_call.1} parent=11 // pred_region
          _
        $region32: #{tpu_custom_call.1} parent=11 // pred_fallthru
          _
        // Predicated region
        $region33: #{tpu_custom_call.1} parent=11 // pred_check
          %p258 = pneg %p171
        $region34: #{tpu_custom_call.1} parent=11 // pred_check_branch
          %260 = sbr.rel (%p258) target = $region36
        $region35: #{tpu_custom_call.1} parent=11 // pred_region
          %s262 = ssub.s32 256, 256
          %263 = vsyncadd [#allocation6], %s262
          %s264 = sshll.u32 [#allocation5], 4
          %s265 = int_to_ptr.vmem [resolvable:$true] %s264
          %270 = dma.hbm_to_vmem [thread:$0]  %s6, 256, %s265, [#allocation6], 128, 128, 8
        $region36: #{tpu_custom_call.1} parent=11 // pred_fallthru
          _
        // Predicated region
        $region37: #{tpu_custom_call.1} parent=11 // pred_check
          %p271 = pneg %p192
        $region38: #{tpu_custom_call.1} parent=11 // pred_check_branch
          %273 = sbr.rel (%p271) target = $region40
        $region39: #{tpu_custom_call.1} parent=11 // pred_region
          _
        $region40: #{tpu_custom_call.1} parent=11 // pred_fallthru
          _
      $region12: #{tpu_custom_call.1} parent=5 // pred_fallthru
        _
      %p274 = scmp.lt.s32.totalorder %s19, 2
      // Predicated region
      $region41: #{tpu_custom_call.1} parent=5 // pred_check
        %p275 = pneg %p274
      $region42: #{tpu_custom_call.1} parent=5 // pred_check_branch
        %277 = sbr.rel (%p275) target = $region44
      $region43: #{tpu_custom_call.1} parent=5 // pred_region
        // Predicated region
        $region45: #{tpu_custom_call.1} parent=43 // pred_check
          %p278 = pneg %p39
        $region46: #{tpu_custom_call.1} parent=43 // pred_check_branch
          %280 = sbr.rel (%p278) target = $region48
        $region47: #{tpu_custom_call.1} parent=43 // pred_region
          %s281 = smul.u32 2, %s19
          %p282 = scmp.lt.s32.totalorder %s281, 3
          %s283 = scalar_select %p282, %s281, 3
          %s284 = smul.addr %s283, 8
          %s285 = scalar_lea.vmem %s0, %s284
          %s286 = smul.u32 2, %s19
        $region48: #{tpu_custom_call.1} parent=43 // pred_fallthru
          _
      $region44: #{tpu_custom_call.1} parent=5 // pred_fallthru
        _
      %p287 = scmp.le.s32.totalorder 1, %s19
      %p288 = scmp.lt.s32.totalorder %s19, 3
      %p289 = pnand %p287, %p288
      %p290 = pneg %p289
      // Predicated region
      $region49: #{tpu_custom_call.1} parent=5 // pred_check
        _
      $region50: #{tpu_custom_call.1} parent=5 // pred_check_branch
        %292 = sbr.rel (%p289) target = $region52
      $region51: #{tpu_custom_call.1} parent=5 // pred_region
        %s293 = ssub.s32 %s19, 1
        // Predicated region
        $region53: #{tpu_custom_call.1} parent=51 // pred_check
          %p294 = pneg %p129
        $region54: #{tpu_custom_call.1} parent=51 // pred_check_branch
          %296 = sbr.rel (%p294) target = $region56
        $region55: #{tpu_custom_call.1} parent=51 // pred_region
          %297 = dma.done [#allocation3], 256
        $region56: #{tpu_custom_call.1} parent=51 // pred_fallthru
          _
        // Predicated region
        $region57: #{tpu_custom_call.1} parent=51 // pred_check
          %p298 = pneg %p171
        $region58: #{tpu_custom_call.1} parent=51 // pred_check_branch
          %300 = sbr.rel (%p298) target = $region60
        $region59: #{tpu_custom_call.1} parent=51 // pred_region
          %301 = dma.done [#allocation6], 256
        $region60: #{tpu_custom_call.1} parent=51 // pred_fallthru
          _
        %s302 = smul.u32 2, %s24
        %p303 = scmp.lt.s32.totalorder %s302, 3
        %s304 = scalar_select %p303, %s302, 3
        %s305 = smul.addr %s304, 8
        %s306 = scalar_lea.vmem %s0, %s305
        %p307 = pneg %p45
        %p308 = pneg %p42
        %p309 = pneg %p66
        %p310 = pneg %p63
        %p311 = pneg %p87
        %p312 = pneg %p84
        %p313 = pneg %p108
        %p314 = pneg %p105
        %p315 = pneg %p129
        %p316 = pneg %p126
        %p317 = pneg %p150
        %p318 = pneg %p147
        %p319 = pneg %p171
        %p320 = pneg %p168
        %p321 = pneg %p192
        %p322 = pneg %p189
        %p323 = pneg %p218
        %p324 = pneg %p215
        %s325 = sand.u32 %s205, 1
        %s326 = scalar_lea.sflag [#allocation4], %s325
        %s327 = sand.u32 %s205, 1
        %s328 = smul.addr %s327, 16
        %s329 = scalar_lea.vmem [#allocation7], %s328
        %s330 = smul.u32 2, %s24
        %p331 = scmp.lt.s32.totalorder %s330, 3
        %s332 = scalar_select %p331, %s330, 3
        %s333 = smul.addr %s332, 8
        %s334 = scalar_lea.vmem %s0, %s333
        %s335 = smul.u32 2, %s24
        %s336 = smul.u32 2, %s24
        %v337 = vld [vmem:[%s334] sm:$0xff]
        %v338 = vld [vmem:[%s334 + $0x8] sm:$0xff]
        %v339 = vld [vmem:[#allocation2] sm:$0xff]
        %v340 = vld [vmem:[#allocation2 + $0x8] sm:$0x7f]
        %v341 = vld [vmem:[%s5] sm:$0x1f]
        %v342 = vld [vmem:[%s1] sm:$0xff]
        %v343 = vld [vmem:[%s1 + $0x8] sm:$0xff]
        %v344 = vlaneseq
        %v345 = vshrl.u32 %v344, 7
        %v346 = vsub.s32 0, %v345
        %v347 = vrot.slane %v339, %v346
        %vm348 = vcmask 130048
        %v350 = vsel %vm348, %v337, 0
        %v353 = vsel %vm348, %v338, 0
        %355 = vmatprep.subr.mxu0 0.0
        %356 = vmatpush1.msra.mxu0 0.0
        %357 = vmatprep.subr.mxu0 0.0
        %358 = vmatpush1.msra.mxu0 0.0
        %359 = vmatprep.subr.mxu0 0.0
        %360 = vmatpush1.msra.mxu0 0.0
        %361 = vmatprep.subr.mxu0 0.0
        %362 = vmatpush1.msra.mxu0 0.0
        %363 = vmatprep.subr.mxu0 0.0
        %364 = vmatpush1.msra.mxu0 0.0
        %365 = vmatprep.subr.mxu0 0.0
        %366 = vmatpush1.msra.mxu0 0.0
        %367 = vmatprep.subr.mxu0 0.0
        %368 = vmatpush1.msra.mxu0 0.0
        %369 = vmatprep.subr.mxu0 0.0
        %370 = vmatpush1.msra.mxu0 0.0
        %371 = vmatprep.subr.mxu0 0.0
        %372 = vmatpush1.msra.mxu0 0.0
        %373 = vmatprep.subr.mxu0 0.0
        %374 = vmatpush1.msra.mxu0 0.0
        %375 = vmatprep.subr.mxu0 0.0
        %376 = vmatpush1.msra.mxu0 0.0
        %377 = vmatprep.subr.mxu0 0.0
        %378 = vmatpush1.msra.mxu0 0.0
        %379 = vmatprep.subr.mxu0 0.0
        %380 = vmatpush1.msra.mxu0 0.0
        %381 = vmatprep.subr.mxu0 0.0
        %382 = vmatpush1.msra.mxu0 0.0
        %383 = vmatprep.subr.mxu0 0.0
        %384 = vmatpush1.msra.mxu0 %v343
        %385 = vmatprep.subr.mxu0 0.0
        %386 = vmatpush1.msra.mxu0 %v342
        %387 = vmatprep.subr.mxu0 0.0
        %388 = vmatpush2.msra.mxu0 0.0
        %389 = vmatprep.subr.mxu0 0.0
        %390 = vmatpush2.msra.mxu0 0.0
        %391 = vmatprep.subr.mxu0 0.0
        %392 = vmatpush2.msra.mxu0 0.0
        %393 = vmatprep.subr.mxu0 0.0
        %394 = vmatpush2.msra.mxu0 0.0
        %395 = vmatprep.subr.mxu0 0.0
        %396 = vmatpush2.msra.mxu0 0.0
        %397 = vmatprep.subr.mxu0 0.0
        %398 = vmatpush2.msra.mxu0 0.0
        %399 = vmatprep.subr.mxu0 0.0
        %400 = vmatpush2.msra.mxu0 0.0
        %401 = vmatprep.subr.mxu0 0.0
        %402 = vmatpush2.msra.mxu0 0.0
        %403 = vmatprep.subr.mxu0 0.0
        %404 = vmatpush2.msra.mxu0 0.0
        %405 = vmatprep.subr.mxu0 0.0
        %406 = vmatpush2.msra.mxu0 0.0
        %407 = vmatprep.subr.mxu0 0.0
        %408 = vmatpush2.msra.mxu0 0.0
        %409 = vmatprep.subr.mxu0 0.0
        %410 = vmatpush2.msra.mxu0 0.0
        %411 = vmatprep.subr.mxu0 0.0
        %412 = vmatpush2.msra.mxu0 0.0
        %413 = vmatprep.subr.mxu0 0.0
        %414 = vmatpush2.msra.mxu0 0.0
        %415 = vmatprep.subr.mxu0 0.0
        %416 = vmatpush2.msra.mxu0 0.0
        %417 = vmatprep.subr.mxu0 0.0
        %418 = vmatpush2.msra.mxu0 0.0
        %419 = vmatprep.mubr.f32.mxu0 0.0
        %420 = vmatmul.mubr.f32.gmra.mxu0 %v350
        %v421 = vpop.f32.mrf.mxu0
        %v422 = vadd.f32 %v347, %v421
        %v423 = vpop.f32.mrf.mxu0
        %424 = vmatprep.mubr.f32.mxu0 0.0
        %425 = vmatmul.mubr.f32.gmra.mxu0 %v353
        %v426 = vpop.f32.mrf.mxu0
        %v427 = vadd.f32 %v347, %v426
        %v428 = vpop.f32.mrf.mxu0
        %429 = vdwg.mxu0
        %vm430 = vcmask 261120
        %v431 = vsel %vm430, %v422, 0.0
        %432 = vadd.xlane.f32.xlu0 %v431
        %v433 = vpop.xlane.xlu0 %432
        %v434 = vsel %vm430, %v427, 0.0
        %435 = vadd.xlane.f32.xlu0 %v434
        %v436 = vpop.xlane.xlu0 %435
        %v437 = vrcp.pop 32.0
        %v438 = vmul.f32 %v433, %v437
        %v439 = vmul.f32 %v436, %v437
        %v440 = vmul.f32 %v422, %v422
        %v441 = vmul.f32 %v427, %v427
        %v442 = vsel %vm430, %v440, 0.0
        %443 = vadd.xlane.f32.xlu0 %v442
        %v444 = vpop.xlane.xlu0 %443
        %v445 = vsel %vm430, %v441, 0.0
        %446 = vadd.xlane.f32.xlu0 %v445
        %v447 = vpop.xlane.xlu0 %446
        %v448 = vmul.f32 %v444, %v437
        %v449 = vmul.f32 %v447, %v437
        %v450 = vmul.f32 %v438, %v438
        %v451 = vmul.f32 %v439, %v439
        %v452 = vsub.f32 %v448, %v450
        %v453 = vsub.f32 %v449, %v451
        %v454 = vmax.f32 %v452, 0.0
        %v455 = vmax.f32 %v453, 0.0
        %v456 = vsub.f32 %v422, %v438
        %v457 = vsub.f32 %v427, %v439
        %v458 = vadd.f32 %v454, 1e-05
        %v459 = vadd.f32 %v455, 1e-05
        %v460 = vrsqrt.pop %v458
        %v461 = vrsqrt.pop %v459
        %v462 = vmul.f32 %v456, %v460
        %v463 = vmul.f32 %v457, %v461
        %v464 = vlaneseq
        %v465 = vshrl.u32 %v464, 7
        %v466 = vsub.s32 1, %v465
        %v467 = vrot.slane %v339, %v466
        %v468 = vmul.f32 %v462, %v467
        %v469 = vmul.f32 %v463, %v467
        %v470 = vlaneseq
        %v471 = vshrl.u32 %v470, 7
        %v472 = vsub.s32 2, %v471
        %v473 = vrot.slane %v339, %v472
        %v474 = vadd.f32 %v468, %v473
        %v475 = vadd.f32 %v469, %v473
        %v476 = vmax.f32 %v474, 0.0
        %v477 = vmax.f32 %v475, 0.0
        %v478 = vld [vmem:[%s2] sm:$0xff]
        %v479 = vld [vmem:[%s2 + $0x8] sm:$0xff]
        %v480 = vld [vmem:[%s2 + $0x10] sm:$0xff]
        %v481 = vld [vmem:[%s2 + $0x18] sm:$0xff]
        %v482 = vlaneseq
        %v483 = vshrl.u32 %v482, 7
        %v484 = vsub.s32 3, %v483
        %v485 = vrot.slane %v339, %v484
        %v487 = vsel %vm430, %v476, 0
        %v490 = vsel %vm430, %v477, 0
        %492 = vmatprep.subr.mxu0 0.0
        %493 = vmatpush1.msra.mxu0 0.0
        %494 = vmatprep.subr.mxu0 0.0
        %495 = vmatpush1.msra.mxu0 0.0
        %496 = vmatprep.subr.mxu0 0.0
        %497 = vmatpush1.msra.mxu0 0.0
        %498 = vmatprep.subr.mxu0 0.0
        %499 = vmatpush1.msra.mxu0 0.0
        %500 = vmatprep.subr.mxu0 0.0
        %501 = vmatpush1.msra.mxu0 0.0
        %502 = vmatprep.subr.mxu0 0.0
        %503 = vmatpush1.msra.mxu0 0.0
        %504 = vmatprep.subr.mxu0 0.0
        %505 = vmatpush1.msra.mxu0 0.0
        %506 = vmatprep.subr.mxu0 0.0
        %507 = vmatpush1.msra.mxu0 0.0
        %508 = vmatprep.subr.mxu0 0.0
        %509 = vmatpush1.msra.mxu0 0.0
        %510 = vmatprep.subr.mxu0 0.0
        %511 = vmatpush1.msra.mxu0 0.0
        %512 = vmatprep.subr.mxu0 0.0
        %513 = vmatpush1.msra.mxu0 0.0
        %514 = vmatprep.subr.mxu0 0.0
        %515 = vmatpush1.msra.mxu0 0.0
        %516 = vmatprep.subr.mxu0 0.0
        %517 = vmatpush1.msra.mxu0 %v481
        %518 = vmatprep.subr.mxu0 0.0
        %519 = vmatpush1.msra.mxu0 %v480
        %520 = vmatprep.subr.mxu0 0.0
        %521 = vmatpush1.msra.mxu0 %v479
        %522 = vmatprep.subr.mxu0 0.0
        %523 = vmatpush1.msra.mxu0 %v478
        %524 = vmatprep.subr.mxu0 0.0
        %525 = vmatpush2.msra.mxu0 0.0
        %526 = vmatprep.subr.mxu0 0.0
        %527 = vmatpush2.msra.mxu0 0.0
        %528 = vmatprep.subr.mxu0 0.0
        %529 = vmatpush2.msra.mxu0 0.0
        %530 = vmatprep.subr.mxu0 0.0
        %531 = vmatpush2.msra.mxu0 0.0
        %532 = vmatprep.subr.mxu0 0.0
        %533 = vmatpush2.msra.mxu0 0.0
        %534 = vmatprep.subr.mxu0 0.0
        %535 = vmatpush2.msra.mxu0 0.0
        %536 = vmatprep.subr.mxu0 0.0
        %537 = vmatpush2.msra.mxu0 0.0
        %538 = vmatprep.subr.mxu0 0.0
        %539 = vmatpush2.msra.mxu0 0.0
        %540 = vmatprep.subr.mxu0 0.0
        %541 = vmatpush2.msra.mxu0 0.0
        %542 = vmatprep.subr.mxu0 0.0
        %543 = vmatpush2.msra.mxu0 0.0
        %544 = vmatprep.subr.mxu0 0.0
        %545 = vmatpush2.msra.mxu0 0.0
        %546 = vmatprep.subr.mxu0 0.0
        %547 = vmatpush2.msra.mxu0 0.0
        %548 = vmatprep.subr.mxu0 0.0
        %549 = vmatpush2.msra.mxu0 0.0
        %550 = vmatprep.subr.mxu0 0.0
        %551 = vmatpush2.msra.mxu0 0.0
        %552 = vmatprep.subr.mxu0 0.0
        %553 = vmatpush2.msra.mxu0 0.0
        %554 = vmatprep.subr.mxu0 0.0
        %555 = vmatpush2.msra.mxu0 0.0
        %556 = vmatprep.mubr.f32.mxu0 0.0
        %557 = vmatmul.mubr.f32.gmra.mxu0 %v487
        %v558 = vpop.f32.mrf.mxu0
        %v559 = vadd.f32 %v485, %v558
        %v560 = vpop.f32.mrf.mxu0
        %561 = vmatprep.mubr.f32.mxu0 0.0
        %562 = vmatmul.mubr.f32.gmra.mxu0 %v490
        %v563 = vpop.f32.mrf.mxu0
        %v564 = vadd.f32 %v485, %v563
        %v565 = vpop.f32.mrf.mxu0
        %566 = vdwg.mxu0
        %v567 = vsel %vm430, %v559, 0.0
        %568 = vadd.xlane.f32.xlu0 %v567
        %v569 = vpop.xlane.xlu0 %568
        %v570 = vsel %vm430, %v564, 0.0
        %571 = vadd.xlane.f32.xlu0 %v570
        %v572 = vpop.xlane.xlu0 %571
        %v573 = vmul.f32 %v569, %v437
        %v574 = vmul.f32 %v572, %v437
        %v575 = vmul.f32 %v559, %v559
        %v576 = vmul.f32 %v564, %v564
        %v577 = vsel %vm430, %v575, 0.0
        %578 = vadd.xlane.f32.xlu0 %v577
        %v579 = vpop.xlane.xlu0 %578
        %v580 = vsel %vm430, %v576, 0.0
        %581 = vadd.xlane.f32.xlu0 %v580
        %v582 = vpop.xlane.xlu0 %581
        %v583 = vmul.f32 %v579, %v437
        %v584 = vmul.f32 %v582, %v437
        %v585 = vmul.f32 %v573, %v573
        %v586 = vmul.f32 %v574, %v574
        %v587 = vsub.f32 %v583, %v585
        %v588 = vsub.f32 %v584, %v586
        %v589 = vmax.f32 %v587, 0.0
        %v590 = vmax.f32 %v588, 0.0
        %v591 = vsub.f32 %v559, %v573
        %v592 = vsub.f32 %v564, %v574
        %v593 = vadd.f32 %v589, 1e-05
        %v594 = vadd.f32 %v590, 1e-05
        %v595 = vrsqrt.pop %v593
        %v596 = vrsqrt.pop %v594
        %v597 = vmul.f32 %v591, %v595
        %v598 = vmul.f32 %v592, %v596
        %v599 = vlaneseq
        %v600 = vshrl.u32 %v599, 7
        %v601 = vsub.s32 4, %v600
        %v602 = vrot.slane %v339, %v601
        %v603 = vmul.f32 %v597, %v602
        %v604 = vmul.f32 %v598, %v602
        %v605 = vlaneseq
        %v606 = vshrl.u32 %v605, 7
        %v607 = vsub.s32 5, %v606
        %v608 = vrot.slane %v339, %v607
        %v609 = vadd.f32 %v603, %v608
        %v610 = vadd.f32 %v604, %v608
        %v611 = vmax.f32 %v609, 0.0
        %v612 = vmax.f32 %v610, 0.0
        %s613 = scalar_lea.vmem %s2, 32
        %v614 = vld [vmem:[%s613] sm:$0xff]
        %v615 = vld [vmem:[%s613 + $0x8] sm:$0xff]
        %v616 = vld [vmem:[%s613 + $0x10] sm:$0xff]
        %v617 = vld [vmem:[%s613 + $0x18] sm:$0xff]
        %v618 = vlaneseq
        %v619 = vshrl.u32 %v618, 7
        %v620 = vsub.s32 6, %v619
        %v621 = vrot.slane %v339, %v620
        %v623 = vsel %vm430, %v611, 0
        %v626 = vsel %vm430, %v612, 0
        %628 = vmatprep.subr.mxu0 0.0
        %629 = vmatpush1.msra.mxu0 0.0
        %630 = vmatprep.subr.mxu0 0.0
        %631 = vmatpush1.msra.mxu0 0.0
        %632 = vmatprep.subr.mxu0 0.0
        %633 = vmatpush1.msra.mxu0 0.0
        %634 = vmatprep.subr.mxu0 0.0
        %635 = vmatpush1.msra.mxu0 0.0
        %636 = vmatprep.subr.mxu0 0.0
        %637 = vmatpush1.msra.mxu0 0.0
        %638 = vmatprep.subr.mxu0 0.0
        %639 = vmatpush1.msra.mxu0 0.0
        %640 = vmatprep.subr.mxu0 0.0
        %641 = vmatpush1.msra.mxu0 0.0
        %642 = vmatprep.subr.mxu0 0.0
        %643 = vmatpush1.msra.mxu0 0.0
        %644 = vmatprep.subr.mxu0 0.0
        %645 = vmatpush1.msra.mxu0 0.0
        %646 = vmatprep.subr.mxu0 0.0
        %647 = vmatpush1.msra.mxu0 0.0
        %648 = vmatprep.subr.mxu0 0.0
        %649 = vmatpush1.msra.mxu0 0.0
        %650 = vmatprep.subr.mxu0 0.0
        %651 = vmatpush1.msra.mxu0 0.0
        %652 = vmatprep.subr.mxu0 0.0
        %653 = vmatpush1.msra.mxu0 %v617
        %654 = vmatprep.subr.mxu0 0.0
        %655 = vmatpush1.msra.mxu0 %v616
        %656 = vmatprep.subr.mxu0 0.0
        %657 = vmatpush1.msra.mxu0 %v615
        %658 = vmatprep.subr.mxu0 0.0
        %659 = vmatpush1.msra.mxu0 %v614
        %660 = vmatprep.subr.mxu0 0.0
        %661 = vmatpush2.msra.mxu0 0.0
        %662 = vmatprep.subr.mxu0 0.0
        %663 = vmatpush2.msra.mxu0 0.0
        %664 = vmatprep.subr.mxu0 0.0
        %665 = vmatpush2.msra.mxu0 0.0
        %666 = vmatprep.subr.mxu0 0.0
        %667 = vmatpush2.msra.mxu0 0.0
        %668 = vmatprep.subr.mxu0 0.0
        %669 = vmatpush2.msra.mxu0 0.0
        %670 = vmatprep.subr.mxu0 0.0
        %671 = vmatpush2.msra.mxu0 0.0
        %672 = vmatprep.subr.mxu0 0.0
        %673 = vmatpush2.msra.mxu0 0.0
        %674 = vmatprep.subr.mxu0 0.0
        %675 = vmatpush2.msra.mxu0 0.0
        %676 = vmatprep.subr.mxu0 0.0
        %677 = vmatpush2.msra.mxu0 0.0
        %678 = vmatprep.subr.mxu0 0.0
        %679 = vmatpush2.msra.mxu0 0.0
        %680 = vmatprep.subr.mxu0 0.0
        %681 = vmatpush2.msra.mxu0 0.0
        %682 = vmatprep.subr.mxu0 0.0
        %683 = vmatpush2.msra.mxu0 0.0
        %684 = vmatprep.subr.mxu0 0.0
        %685 = vmatpush2.msra.mxu0 0.0
        %686 = vmatprep.subr.mxu0 0.0
        %687 = vmatpush2.msra.mxu0 0.0
        %688 = vmatprep.subr.mxu0 0.0
        %689 = vmatpush2.msra.mxu0 0.0
        %690 = vmatprep.subr.mxu0 0.0
        %691 = vmatpush2.msra.mxu0 0.0
        %692 = vmatprep.mubr.f32.mxu0 0.0
        %693 = vmatmul.mubr.f32.gmra.mxu0 %v623
        %v694 = vpop.f32.mrf.mxu0
        %v695 = vadd.f32 %v621, %v694
        %v696 = vpop.f32.mrf.mxu0
        %697 = vmatprep.mubr.f32.mxu0 0.0
        %698 = vmatmul.mubr.f32.gmra.mxu0 %v626
        %v699 = vpop.f32.mrf.mxu0
        %v700 = vadd.f32 %v621, %v699
        %v701 = vpop.f32.mrf.mxu0
        %702 = vdwg.mxu0
        %v703 = vsel %vm430, %v695, 0.0
        %704 = vadd.xlane.f32.xlu0 %v703
        %v705 = vpop.xlane.xlu0 %704
        %v706 = vsel %vm430, %v700, 0.0
        %707 = vadd.xlane.f32.xlu0 %v706
        %v708 = vpop.xlane.xlu0 %707
        %v709 = vmul.f32 %v705, %v437
        %v710 = vmul.f32 %v708, %v437
        %v711 = vmul.f32 %v695, %v695
        %v712 = vmul.f32 %v700, %v700
        %v713 = vsel %vm430, %v711, 0.0
        %714 = vadd.xlane.f32.xlu0 %v713
        %v715 = vpop.xlane.xlu0 %714
        %v716 = vsel %vm430, %v712, 0.0
        %717 = vadd.xlane.f32.xlu0 %v716
        %v718 = vpop.xlane.xlu0 %717
        %v719 = vmul.f32 %v715, %v437
        %v720 = vmul.f32 %v718, %v437
        %v721 = vmul.f32 %v709, %v709
        %v722 = vmul.f32 %v710, %v710
        %v723 = vsub.f32 %v719, %v721
        %v724 = vsub.f32 %v720, %v722
        %v725 = vmax.f32 %v723, 0.0
        %v726 = vmax.f32 %v724, 0.0
        %v727 = vsub.f32 %v695, %v709
        %v728 = vsub.f32 %v700, %v710
        %v729 = vadd.f32 %v725, 1e-05
        %v730 = vadd.f32 %v726, 1e-05
        %v731 = vrsqrt.pop %v729
        %v732 = vrsqrt.pop %v730
        %v733 = vmul.f32 %v727, %v731
        %v734 = vmul.f32 %v728, %v732
        %v735 = vlaneseq
        %v736 = vshrl.u32 %v735, 7
        %v737 = vsub.s32 7, %v736
        %v738 = vrot.slane %v339, %v737
        %v739 = vmul.f32 %v733, %v738
        %v740 = vmul.f32 %v734, %v738
        %v741 = vlaneseq
        %v742 = vshrl.u32 %v741, 7
        %v743 = vsub.s32 0, %v742
        %v744 = vrot.slane %v340, %v743
        %v745 = vadd.f32 %v739, %v744
        %v746 = vadd.f32 %v740, %v744
        %v747 = vadd.f32 %v476, %v745
        %v748 = vadd.f32 %v477, %v746
        %s749 = scalar_lea.vmem %s2, 64
        %v750 = vld [vmem:[%s749] sm:$0xff]
        %v751 = vld [vmem:[%s749 + $0x8] sm:$0xff]
        %v752 = vld [vmem:[%s749 + $0x10] sm:$0xff]
        %v753 = vld [vmem:[%s749 + $0x18] sm:$0xff]
        %v754 = vlaneseq
        %v755 = vshrl.u32 %v754, 7
        %v756 = vsub.s32 1, %v755
        %v757 = vrot.slane %v340, %v756
        %v759 = vsel %vm430, %v747, 0
        %v762 = vsel %vm430, %v748, 0
        %764 = vmatprep.subr.mxu0 0.0
        %765 = vmatpush1.msra.mxu0 0.0
        %766 = vmatprep.subr.mxu0 0.0
        %767 = vmatpush1.msra.mxu0 0.0
        %768 = vmatprep.subr.mxu0 0.0
        %769 = vmatpush1.msra.mxu0 0.0
        %770 = vmatprep.subr.mxu0 0.0
        %771 = vmatpush1.msra.mxu0 0.0
        %772 = vmatprep.subr.mxu0 0.0
        %773 = vmatpush1.msra.mxu0 0.0
        %774 = vmatprep.subr.mxu0 0.0
        %775 = vmatpush1.msra.mxu0 0.0
        %776 = vmatprep.subr.mxu0 0.0
        %777 = vmatpush1.msra.mxu0 0.0
        %778 = vmatprep.subr.mxu0 0.0
        %779 = vmatpush1.msra.mxu0 0.0
        %780 = vmatprep.subr.mxu0 0.0
        %781 = vmatpush1.msra.mxu0 0.0
        %782 = vmatprep.subr.mxu0 0.0
        %783 = vmatpush1.msra.mxu0 0.0
        %784 = vmatprep.subr.mxu0 0.0
        %785 = vmatpush1.msra.mxu0 0.0
        %786 = vmatprep.subr.mxu0 0.0
        %787 = vmatpush1.msra.mxu0 0.0
        %788 = vmatprep.subr.mxu0 0.0
        %789 = vmatpush1.msra.mxu0 %v753
        %790 = vmatprep.subr.mxu0 0.0
        %791 = vmatpush1.msra.mxu0 %v752
        %792 = vmatprep.subr.mxu0 0.0
        %793 = vmatpush1.msra.mxu0 %v751
        %794 = vmatprep.subr.mxu0 0.0
        %795 = vmatpush1.msra.mxu0 %v750
        %796 = vmatprep.subr.mxu0 0.0
        %797 = vmatpush2.msra.mxu0 0.0
        %798 = vmatprep.subr.mxu0 0.0
        %799 = vmatpush2.msra.mxu0 0.0
        %800 = vmatprep.subr.mxu0 0.0
        %801 = vmatpush2.msra.mxu0 0.0
        %802 = vmatprep.subr.mxu0 0.0
        %803 = vmatpush2.msra.mxu0 0.0
        %804 = vmatprep.subr.mxu0 0.0
        %805 = vmatpush2.msra.mxu0 0.0
        %806 = vmatprep.subr.mxu0 0.0
        %807 = vmatpush2.msra.mxu0 0.0
        %808 = vmatprep.subr.mxu0 0.0
        %809 = vmatpush2.msra.mxu0 0.0
        %810 = vmatprep.subr.mxu0 0.0
        %811 = vmatpush2.msra.mxu0 0.0
        %812 = vmatprep.subr.mxu0 0.0
        %813 = vmatpush2.msra.mxu0 0.0
        %814 = vmatprep.subr.mxu0 0.0
        %815 = vmatpush2.msra.mxu0 0.0
        %816 = vmatprep.subr.mxu0 0.0
        %817 = vmatpush2.msra.mxu0 0.0
        %818 = vmatprep.subr.mxu0 0.0
        %819 = vmatpush2.msra.mxu0 0.0
        %820 = vmatprep.subr.mxu0 0.0
        %821 = vmatpush2.msra.mxu0 0.0
        %822 = vmatprep.subr.mxu0 0.0
        %823 = vmatpush2.msra.mxu0 0.0
        %824 = vmatprep.subr.mxu0 0.0
        %825 = vmatpush2.msra.mxu0 0.0
        %826 = vmatprep.subr.mxu0 0.0
        %827 = vmatpush2.msra.mxu0 0.0
        %828 = vmatprep.mubr.f32.mxu0 0.0
        %829 = vmatmul.mubr.f32.gmra.mxu0 %v759
        %v830 = vpop.f32.mrf.mxu0
        %v831 = vadd.f32 %v757, %v830
        %v832 = vpop.f32.mrf.mxu0
        %833 = vmatprep.mubr.f32.mxu0 0.0
        %834 = vmatmul.mubr.f32.gmra.mxu0 %v762
        %v835 = vpop.f32.mrf.mxu0
        %v836 = vadd.f32 %v757, %v835
        %v837 = vpop.f32.mrf.mxu0
        %838 = vdwg.mxu0
        %v839 = vsel %vm430, %v831, 0.0
        %840 = vadd.xlane.f32.xlu0 %v839
        %v841 = vpop.xlane.xlu0 %840
        %v842 = vsel %vm430, %v836, 0.0
        %843 = vadd.xlane.f32.xlu0 %v842
        %v844 = vpop.xlane.xlu0 %843
        %v845 = vmul.f32 %v841, %v437
        %v846 = vmul.f32 %v844, %v437
        %v847 = vmul.f32 %v831, %v831
        %v848 = vmul.f32 %v836, %v836
        %v849 = vsel %vm430, %v847, 0.0
        %850 = vadd.xlane.f32.xlu0 %v849
        %v851 = vpop.xlane.xlu0 %850
        %v852 = vsel %vm430, %v848, 0.0
        %853 = vadd.xlane.f32.xlu0 %v852
        %v854 = vpop.xlane.xlu0 %853
        %v855 = vmul.f32 %v851, %v437
        %v856 = vmul.f32 %v854, %v437
        %v857 = vmul.f32 %v845, %v845
        %v858 = vmul.f32 %v846, %v846
        %v859 = vsub.f32 %v855, %v857
        %v860 = vsub.f32 %v856, %v858
        %v861 = vmax.f32 %v859, 0.0
        %v862 = vmax.f32 %v860, 0.0
        %v863 = vsub.f32 %v831, %v845
        %v864 = vsub.f32 %v836, %v846
        %v865 = vadd.f32 %v861, 1e-05
        %v866 = vadd.f32 %v862, 1e-05
        %v867 = vrsqrt.pop %v865
        %v868 = vrsqrt.pop %v866
        %v869 = vmul.f32 %v863, %v867
        %v870 = vmul.f32 %v864, %v868
        %v871 = vlaneseq
        %v872 = vshrl.u32 %v871, 7
        %v873 = vsub.s32 2, %v872
        %v874 = vrot.slane %v340, %v873
        %v875 = vmul.f32 %v869, %v874
        %v876 = vmul.f32 %v870, %v874
        %v877 = vlaneseq
        %v878 = vshrl.u32 %v877, 7
        %v879 = vsub.s32 3, %v878
        %v880 = vrot.slane %v340, %v879
        %v881 = vadd.f32 %v875, %v880
        %v882 = vadd.f32 %v876, %v880
        %v883 = vmax.f32 %v881, 0.0
        %v884 = vmax.f32 %v882, 0.0
        %s885 = scalar_lea.vmem %s2, 96
        %v886 = vld [vmem:[%s885] sm:$0xff]
        %v887 = vld [vmem:[%s885 + $0x8] sm:$0xff]
        %v888 = vld [vmem:[%s885 + $0x10] sm:$0xff]
        %v889 = vld [vmem:[%s885 + $0x18] sm:$0xff]
        %v890 = vlaneseq
        %v891 = vshrl.u32 %v890, 7
        %v892 = vsub.s32 4, %v891
        %v893 = vrot.slane %v340, %v892
        %v895 = vsel %vm430, %v883, 0
        %v898 = vsel %vm430, %v884, 0
        %900 = vmatprep.subr.mxu0 0.0
        %901 = vmatpush1.msra.mxu0 0.0
        %902 = vmatprep.subr.mxu0 0.0
        %903 = vmatpush1.msra.mxu0 0.0
        %904 = vmatprep.subr.mxu0 0.0
        %905 = vmatpush1.msra.mxu0 0.0
        %906 = vmatprep.subr.mxu0 0.0
        %907 = vmatpush1.msra.mxu0 0.0
        %908 = vmatprep.subr.mxu0 0.0
        %909 = vmatpush1.msra.mxu0 0.0
        %910 = vmatprep.subr.mxu0 0.0
        %911 = vmatpush1.msra.mxu0 0.0
        %912 = vmatprep.subr.mxu0 0.0
        %913 = vmatpush1.msra.mxu0 0.0
        %914 = vmatprep.subr.mxu0 0.0
        %915 = vmatpush1.msra.mxu0 0.0
        %916 = vmatprep.subr.mxu0 0.0
        %917 = vmatpush1.msra.mxu0 0.0
        %918 = vmatprep.subr.mxu0 0.0
        %919 = vmatpush1.msra.mxu0 0.0
        %920 = vmatprep.subr.mxu0 0.0
        %921 = vmatpush1.msra.mxu0 0.0
        %922 = vmatprep.subr.mxu0 0.0
        %923 = vmatpush1.msra.mxu0 0.0
        %924 = vmatprep.subr.mxu0 0.0
        %925 = vmatpush1.msra.mxu0 %v889
        %926 = vmatprep.subr.mxu0 0.0
        %927 = vmatpush1.msra.mxu0 %v888
        %928 = vmatprep.subr.mxu0 0.0
        %929 = vmatpush1.msra.mxu0 %v887
        %930 = vmatprep.subr.mxu0 0.0
        %931 = vmatpush1.msra.mxu0 %v886
        %932 = vmatprep.subr.mxu0 0.0
        %933 = vmatpush2.msra.mxu0 0.0
        %934 = vmatprep.subr.mxu0 0.0
        %935 = vmatpush2.msra.mxu0 0.0
        %936 = vmatprep.subr.mxu0 0.0
        %937 = vmatpush2.msra.mxu0 0.0
        %938 = vmatprep.subr.mxu0 0.0
        %939 = vmatpush2.msra.mxu0 0.0
        %940 = vmatprep.subr.mxu0 0.0
        %941 = vmatpush2.msra.mxu0 0.0
        %942 = vmatprep.subr.mxu0 0.0
        %943 = vmatpush2.msra.mxu0 0.0
        %944 = vmatprep.subr.mxu0 0.0
        %945 = vmatpush2.msra.mxu0 0.0
        %946 = vmatprep.subr.mxu0 0.0
        %947 = vmatpush2.msra.mxu0 0.0
        %948 = vmatprep.subr.mxu0 0.0
        %949 = vmatpush2.msra.mxu0 0.0
        %950 = vmatprep.subr.mxu0 0.0
        %951 = vmatpush2.msra.mxu0 0.0
        %952 = vmatprep.subr.mxu0 0.0
        %953 = vmatpush2.msra.mxu0 0.0
        %954 = vmatprep.subr.mxu0 0.0
        %955 = vmatpush2.msra.mxu0 0.0
        %956 = vmatprep.subr.mxu0 0.0
        %957 = vmatpush2.msra.mxu0 0.0
        %958 = vmatprep.subr.mxu0 0.0
        %959 = vmatpush2.msra.mxu0 0.0
        %960 = vmatprep.subr.mxu0 0.0
        %961 = vmatpush2.msra.mxu0 0.0
        %962 = vmatprep.subr.mxu0 0.0
        %963 = vmatpush2.msra.mxu0 0.0
        %964 = vmatprep.mubr.f32.mxu0 0.0
        %965 = vmatmul.mubr.f32.gmra.mxu0 %v895
        %v966 = vpop.f32.mrf.mxu0
        %v967 = vadd.f32 %v893, %v966
        %v968 = vpop.f32.mrf.mxu0
        %969 = vmatprep.mubr.f32.mxu0 0.0
        %970 = vmatmul.mubr.f32.gmra.mxu0 %v898
        %v971 = vpop.f32.mrf.mxu0
        %v972 = vadd.f32 %v893, %v971
        %v973 = vpop.f32.mrf.mxu0
        %974 = vdwg.mxu0
        %v975 = vsel %vm430, %v967, 0.0
        %976 = vadd.xlane.f32.xlu0 %v975
        %v977 = vpop.xlane.xlu0 %976
        %v978 = vsel %vm430, %v972, 0.0
        %979 = vadd.xlane.f32.xlu0 %v978
        %v980 = vpop.xlane.xlu0 %979
        %v981 = vmul.f32 %v977, %v437
        %v982 = vmul.f32 %v980, %v437
        %v983 = vmul.f32 %v967, %v967
        %v984 = vmul.f32 %v972, %v972
        %v985 = vsel %vm430, %v983, 0.0
        %986 = vadd.xlane.f32.xlu0 %v985
        %v987 = vpop.xlane.xlu0 %986
        %v988 = vsel %vm430, %v984, 0.0
        %989 = vadd.xlane.f32.xlu0 %v988
        %v990 = vpop.xlane.xlu0 %989
        %v991 = vmul.f32 %v987, %v437
        %v992 = vmul.f32 %v990, %v437
        %v993 = vmul.f32 %v981, %v981
        %v994 = vmul.f32 %v982, %v982
        %v995 = vsub.f32 %v991, %v993
        %v996 = vsub.f32 %v992, %v994
        %v997 = vmax.f32 %v995, 0.0
        %v998 = vmax.f32 %v996, 0.0
        %v999 = vsub.f32 %v967, %v981
        %v1000 = vsub.f32 %v972, %v982
        %v1001 = vadd.f32 %v997, 1e-05
        %v1002 = vadd.f32 %v998, 1e-05
        %v1003 = vrsqrt.pop %v1001
        %v1004 = vrsqrt.pop %v1002
        %v1005 = vmul.f32 %v999, %v1003
        %v1006 = vmul.f32 %v1000, %v1004
        %v1007 = vlaneseq
        %v1008 = vshrl.u32 %v1007, 7
        %v1009 = vsub.s32 5, %v1008
        %v1010 = vrot.slane %v340, %v1009
        %v1011 = vmul.f32 %v1005, %v1010
        %v1012 = vmul.f32 %v1006, %v1010
        %v1013 = vlaneseq
        %v1014 = vshrl.u32 %v1013, 7
        %v1015 = vsub.s32 6, %v1014
        %v1016 = vrot.slane %v340, %v1015
        %v1017 = vadd.f32 %v1011, %v1016
        %v1018 = vadd.f32 %v1012, %v1016
        %v1019 = vadd.f32 %v747, %v1017
        %v1020 = vadd.f32 %v748, %v1018
        %v1021 = vld [vmem:[%s3] sm:$0xff]
        %v1022 = vld [vmem:[%s3 + $0x8] sm:$0xff]
        %v1023 = vld [vmem:[%s3 + $0x10] sm:$0xff]
        %v1024 = vld [vmem:[%s3 + $0x18] sm:$0xff]
        %v1025 = vlaneseq
        %v1026 = vshrl.u32 %v1025, 7
        %v1027 = vsub.s32 0, %v1026
        %v1028 = vrot.slane %v341, %v1027
        %v1030 = vsel %vm430, %v1019, 0
        %v1033 = vsel %vm430, %v1020, 0
        %1035 = vmatprep.subr.mxu0 0.0
        %1036 = vmatpush1.msra.mxu0 0.0
        %1037 = vmatprep.subr.mxu0 0.0
        %1038 = vmatpush1.msra.mxu0 0.0
        %1039 = vmatprep.subr.mxu0 0.0
        %1040 = vmatpush1.msra.mxu0 0.0
        %1041 = vmatprep.subr.mxu0 0.0
        %1042 = vmatpush1.msra.mxu0 0.0
        %1043 = vmatprep.subr.mxu0 0.0
        %1044 = vmatpush1.msra.mxu0 0.0
        %1045 = vmatprep.subr.mxu0 0.0
        %1046 = vmatpush1.msra.mxu0 0.0
        %1047 = vmatprep.subr.mxu0 0.0
        %1048 = vmatpush1.msra.mxu0 0.0
        %1049 = vmatprep.subr.mxu0 0.0
        %1050 = vmatpush1.msra.mxu0 0.0
        %1051 = vmatprep.subr.mxu0 0.0
        %1052 = vmatpush1.msra.mxu0 0.0
        %1053 = vmatprep.subr.mxu0 0.0
        %1054 = vmatpush1.msra.mxu0 0.0
        %1055 = vmatprep.subr.mxu0 0.0
        %1056 = vmatpush1.msra.mxu0 0.0
        %1057 = vmatprep.subr.mxu0 0.0
        %1058 = vmatpush1.msra.mxu0 0.0
        %1059 = vmatprep.subr.mxu0 0.0
        %1060 = vmatpush1.msra.mxu0 %v1024
        %1061 = vmatprep.subr.mxu0 0.0
        %1062 = vmatpush1.msra.mxu0 %v1023
        %1063 = vmatprep.subr.mxu0 0.0
        %1064 = vmatpush1.msra.mxu0 %v1022
        %1065 = vmatprep.subr.mxu0 0.0
        %1066 = vmatpush1.msra.mxu0 %v1021
        %1067 = vmatprep.subr.mxu0 0.0
        %1068 = vmatpush2.msra.mxu0 0.0
        %1069 = vmatprep.subr.mxu0 0.0
        %1070 = vmatpush2.msra.mxu0 0.0
        %1071 = vmatprep.subr.mxu0 0.0
        %1072 = vmatpush2.msra.mxu0 0.0
        %1073 = vmatprep.subr.mxu0 0.0
        %1074 = vmatpush2.msra.mxu0 0.0
        %1075 = vmatprep.subr.mxu0 0.0
        %1076 = vmatpush2.msra.mxu0 0.0
        %1077 = vmatprep.subr.mxu0 0.0
        %1078 = vmatpush2.msra.mxu0 0.0
        %1079 = vmatprep.subr.mxu0 0.0
        %1080 = vmatpush2.msra.mxu0 0.0
        %1081 = vmatprep.subr.mxu0 0.0
        %1082 = vmatpush2.msra.mxu0 0.0
        %1083 = vmatprep.subr.mxu0 0.0
        %1084 = vmatpush2.msra.mxu0 0.0
        %1085 = vmatprep.subr.mxu0 0.0
        %1086 = vmatpush2.msra.mxu0 0.0
        %1087 = vmatprep.subr.mxu0 0.0
        %1088 = vmatpush2.msra.mxu0 0.0
        %1089 = vmatprep.subr.mxu0 0.0
        %1090 = vmatpush2.msra.mxu0 0.0
        %1091 = vmatprep.subr.mxu0 0.0
        %1092 = vmatpush2.msra.mxu0 0.0
        %1093 = vmatprep.subr.mxu0 0.0
        %1094 = vmatpush2.msra.mxu0 0.0
        %1095 = vmatprep.subr.mxu0 0.0
        %1096 = vmatpush2.msra.mxu0 0.0
        %1097 = vmatprep.subr.mxu0 0.0
        %1098 = vmatpush2.msra.mxu0 0.0
        %1099 = vmatprep.mubr.f32.mxu0 0.0
        %1100 = vmatmul.mubr.f32.gmra.mxu0 %v1030
        %v1101 = vpop.f32.mrf.mxu0
        %v1102 = vadd.f32 %v1028, %v1101
        %v1103 = vpop.f32.mrf.mxu0
        %1104 = vmatprep.mubr.f32.mxu0 0.0
        %1105 = vmatmul.mubr.f32.gmra.mxu0 %v1033
        %v1106 = vpop.f32.mrf.mxu0
        %v1107 = vadd.f32 %v1028, %v1106
        %v1108 = vpop.f32.mrf.mxu0
        %1109 = vdwg.mxu0
        %v1110 = vtanh.pop %v1102
        %v1111 = vtanh.pop %v1107
        %v1112 = vlaneseq
        %v1113 = vshrl.u32 %v1112, 7
        %v1114 = vsub.s32 4, %v1113
        %v1115 = vrot.slane %v341, %v1114
        %v1116 = vmul.f32 %v1110, %v1115
        %v1117 = vmul.f32 %v1111, %v1115
        %v1118 = vsel %vm348, %v1116, 0.0
        %1119 = vadd.xlane.f32.xlu0 %v1118
        %v1120 = vpop.xlane.xlu0 %1119
        %v1121 = vsel %vm348, %v1117, 0.0
        %1122 = vadd.xlane.f32.xlu0 %v1121
        %v1123 = vpop.xlane.xlu0 %1122
        %v1124 = vlaneseq
        %v1125 = vshrl.u32 %v1124, 7
        %v1126 = vadd.s32 %v1125, 8
        %v1127 = vshra.s32 %v1125, 3
        %v1128 = vshra.s32 %v1126, 3
        %v1129 = vlaneseq
        %v1130 = vand.u32 %v1129, 127
        %vm1131 = vcmp.eq.s32.totalorder %v1127, %v1130
        %vm1132 = vcmp.eq.s32.totalorder %v1128, %v1130
        %v1133 = vsel %vm1131, %v1120, -inf
        %v1134 = vsel %vm1132, %v1123, -inf
        %vm1135 = vcmask 15360
        %v1136 = vsel %vm1135, %v1133, -inf
        %v1137 = vsel %vm1135, %v1134, -inf
        %v1138 = vmax.f32 %v1136, %v1137
        %v1139 = vrot.slane %v1138, 4
        %v1140 = vmax.f32 %v1138, %v1139
        %v1141 = vrot.slane %v1140, 2
        %v1142 = vmax.f32 %v1140, %v1141
        %v1143 = vrot.slane %v1142, 1
        %v1144 = vmax.f32 %v1142, %v1143
        %v1145 = vsub.f32 %v1133, %v1144
        %v1146 = vsub.f32 %v1134, %v1144
        %v1147 = vmul.f32 %v1145, 1.442695
        %v1148 = vpow.pop %v1147
        %v1149 = vmul.f32 %v1146, 1.442695
        %v1150 = vpow.pop %v1149
        %v1151 = vsel %vm1135, %v1148, 0.0
        %v1152 = vsel %vm1135, %v1150, 0.0
        %v1153 = vadd.f32 %v1151, %v1152
        %v1154 = vrot.slane %v1153, 4
        %v1155 = vadd.f32 %v1153, %v1154
        %v1156 = vrot.slane %v1155, 2
        %v1157 = vadd.f32 %v1155, %v1156
        %v1158 = vrot.slane %v1157, 1
        %v1159 = vadd.f32 %v1157, %v1158
        %v1160 = vsel %vm1131, %v1144, 0.0
        %v1161 = vsel %vm1132, %v1144, 0.0
        %v1162 = vsel %vm1135, %v1160, 0.0
        %1163 = vadd.xlane.f32.xlu0 %v1162
        %v1164 = vpop.xlane.xlu0 %1163
        %v1165 = vsel %vm1135, %v1161, 0.0
        %1166 = vadd.xlane.f32.xlu0 %v1165
        %v1167 = vpop.xlane.xlu0 %1166
        %v1168 = vsel %vm1131, %v1159, 0.0
        %v1169 = vsel %vm1132, %v1159, 0.0
        %v1170 = vsel %vm1135, %v1168, 0.0
        %1171 = vadd.xlane.f32.xlu0 %v1170
        %v1172 = vpop.xlane.xlu0 %1171
        %v1173 = vsel %vm1135, %v1169, 0.0
        %1174 = vadd.xlane.f32.xlu0 %v1173
        %v1175 = vpop.xlane.xlu0 %1174
        %v1176 = vsub.f32 %v1120, %v1164
        %v1177 = vsub.f32 %v1123, %v1167
        %v1178 = vmul.f32 %v1176, 1.442695
        %v1179 = vpow.pop %v1178
        %v1180 = vmul.f32 %v1177, 1.442695
        %v1181 = vpow.pop %v1180
        %v1182 = vrcp.pop %v1172
        %v1183 = vmul.f32 %v1179, %v1182
        %v1184 = vrcp.pop %v1175
        %v1185 = vmul.f32 %v1181, %v1184
        %v1186 = vmul.f32 %v1019, %v1183
        %v1187 = vmul.f32 %v1020, %v1185
        %s1188 = scalar_lea.vmem %s3, 32
        %v1189 = vld [vmem:[%s1188] sm:$0xff]
        %v1190 = vld [vmem:[%s1188 + $0x8] sm:$0xff]
        %v1191 = vld [vmem:[%s1188 + $0x10] sm:$0xff]
        %v1192 = vld [vmem:[%s1188 + $0x18] sm:$0xff]
        %v1193 = vlaneseq
        %v1194 = vshrl.u32 %v1193, 7
        %v1195 = vsub.s32 1, %v1194
        %v1196 = vrot.slane %v341, %v1195
        %v1198 = vsel %vm430, %v1186, 0
        %v1201 = vsel %vm430, %v1187, 0
        %1203 = vmatprep.subr.mxu0 0.0
        %1204 = vmatpush1.msra.mxu0 0.0
        %1205 = vmatprep.subr.mxu0 0.0
        %1206 = vmatpush1.msra.mxu0 0.0
        %1207 = vmatprep.subr.mxu0 0.0
        %1208 = vmatpush1.msra.mxu0 0.0
        %1209 = vmatprep.subr.mxu0 0.0
        %1210 = vmatpush1.msra.mxu0 0.0
        %1211 = vmatprep.subr.mxu0 0.0
        %1212 = vmatpush1.msra.mxu0 0.0
        %1213 = vmatprep.subr.mxu0 0.0
        %1214 = vmatpush1.msra.mxu0 0.0
        %1215 = vmatprep.subr.mxu0 0.0
        %1216 = vmatpush1.msra.mxu0 0.0
        %1217 = vmatprep.subr.mxu0 0.0
        %1218 = vmatpush1.msra.mxu0 0.0
        %1219 = vmatprep.subr.mxu0 0.0
        %1220 = vmatpush1.msra.mxu0 0.0
        %1221 = vmatprep.subr.mxu0 0.0
        %1222 = vmatpush1.msra.mxu0 0.0
        %1223 = vmatprep.subr.mxu0 0.0
        %1224 = vmatpush1.msra.mxu0 0.0
        %1225 = vmatprep.subr.mxu0 0.0
        %1226 = vmatpush1.msra.mxu0 0.0
        %1227 = vmatprep.subr.mxu0 0.0
        %1228 = vmatpush1.msra.mxu0 %v1192
        %1229 = vmatprep.subr.mxu0 0.0
        %1230 = vmatpush1.msra.mxu0 %v1191
        %1231 = vmatprep.subr.mxu0 0.0
        %1232 = vmatpush1.msra.mxu0 %v1190
        %1233 = vmatprep.subr.mxu0 0.0
        %1234 = vmatpush1.msra.mxu0 %v1189
        %1235 = vmatprep.subr.mxu0 0.0
        %1236 = vmatpush2.msra.mxu0 0.0
        %1237 = vmatprep.subr.mxu0 0.0
        %1238 = vmatpush2.msra.mxu0 0.0
        %1239 = vmatprep.subr.mxu0 0.0
        %1240 = vmatpush2.msra.mxu0 0.0
        %1241 = vmatprep.subr.mxu0 0.0
        %1242 = vmatpush2.msra.mxu0 0.0
        %1243 = vmatprep.subr.mxu0 0.0
        %1244 = vmatpush2.msra.mxu0 0.0
        %1245 = vmatprep.subr.mxu0 0.0
        %1246 = vmatpush2.msra.mxu0 0.0
        %1247 = vmatprep.subr.mxu0 0.0
        %1248 = vmatpush2.msra.mxu0 0.0
        %1249 = vmatprep.subr.mxu0 0.0
        %1250 = vmatpush2.msra.mxu0 0.0
        %1251 = vmatprep.subr.mxu0 0.0
        %1252 = vmatpush2.msra.mxu0 0.0
        %1253 = vmatprep.subr.mxu0 0.0
        %1254 = vmatpush2.msra.mxu0 0.0
        %1255 = vmatprep.subr.mxu0 0.0
        %1256 = vmatpush2.msra.mxu0 0.0
        %1257 = vmatprep.subr.mxu0 0.0
        %1258 = vmatpush2.msra.mxu0 0.0
        %1259 = vmatprep.subr.mxu0 0.0
        %1260 = vmatpush2.msra.mxu0 0.0
        %1261 = vmatprep.subr.mxu0 0.0
        %1262 = vmatpush2.msra.mxu0 0.0
        %1263 = vmatprep.subr.mxu0 0.0
        %1264 = vmatpush2.msra.mxu0 0.0
        %1265 = vmatprep.subr.mxu0 0.0
        %1266 = vmatpush2.msra.mxu0 0.0
        %1267 = vmatprep.mubr.f32.mxu0 0.0
        %1268 = vmatmul.mubr.f32.gmra.mxu0 %v1198
        %v1269 = vpop.f32.mrf.mxu0
        %v1270 = vadd.f32 %v1196, %v1269
        %v1271 = vpop.f32.mrf.mxu0
        %1272 = vmatprep.mubr.f32.mxu0 0.0
        %1273 = vmatmul.mubr.f32.gmra.mxu0 %v1201
        %v1274 = vpop.f32.mrf.mxu0
        %v1275 = vadd.f32 %v1196, %v1274
        %v1276 = vpop.f32.mrf.mxu0
        %1277 = vdwg.mxu0
        %v1278 = vmax.f32 %v1270, 0.0
        %v1279 = vmax.f32 %v1275, 0.0
        %v1280 = vsel %vm348, %v1278, 0.0
        %1281 = vadd.xlane.f32.xlu0 %v1280
        %v1282 = vpop.xlane.xlu0 %1281
        %v1283 = vsel %vm348, %v1279, 0.0
        %1284 = vadd.xlane.f32.xlu0 %v1283
        %v1285 = vpop.xlane.xlu0 %1284
        %v1286 = vrcp.pop 16.0
        %v1287 = vmul.f32 %v1282, %v1286
        %v1288 = vmul.f32 %v1285, %v1286
        %v1289 = vmul.f32 %v1278, %v1278
        %v1290 = vmul.f32 %v1279, %v1279
        %v1291 = vsel %vm348, %v1289, 0.0
        %1292 = vadd.xlane.f32.xlu0 %v1291
        %v1293 = vpop.xlane.xlu0 %1292
        %v1294 = vsel %vm348, %v1290, 0.0
        %1295 = vadd.xlane.f32.xlu0 %v1294
        %v1296 = vpop.xlane.xlu0 %1295
        %v1297 = vmul.f32 %v1293, %v1286
        %v1298 = vmul.f32 %v1296, %v1286
        %v1299 = vmul.f32 %v1287, %v1287
        %v1300 = vmul.f32 %v1288, %v1288
        %v1301 = vsub.f32 %v1297, %v1299
        %v1302 = vsub.f32 %v1298, %v1300
        %v1303 = vmax.f32 %v1301, 0.0
        %v1304 = vmax.f32 %v1302, 0.0
        %v1305 = vsub.f32 %v1278, %v1287
        %v1306 = vsub.f32 %v1279, %v1288
        %v1307 = vadd.f32 %v1303, 1e-05
        %v1308 = vadd.f32 %v1304, 1e-05
        %v1309 = vrsqrt.pop %v1307
        %v1310 = vrsqrt.pop %v1308
        %v1311 = vmul.f32 %v1305, %v1309
        %v1312 = vmul.f32 %v1306, %v1310
        %v1313 = vlaneseq
        %v1314 = vshrl.u32 %v1313, 7
        %v1315 = vsub.s32 2, %v1314
        %v1316 = vrot.slane %v341, %v1315
        %v1317 = vmul.f32 %v1311, %v1316
        %v1318 = vmul.f32 %v1312, %v1316
        %v1319 = vlaneseq
        %v1320 = vshrl.u32 %v1319, 7
        %v1321 = vsub.s32 3, %v1320
        %v1322 = vrot.slane %v341, %v1321
        %v1323 = vadd.f32 %v1317, %v1322
        %v1324 = vadd.f32 %v1318, %v1322
        %v1325 = vld [vmem:[#allocation5] sm:$0xff]
        %v1326 = vld [vmem:[#allocation5 + $0x8] sm:$0xff]
        %v1327 = vld [vmem:[%s7] sm:$0x1]
        %v1329 = vlaneseq
        %v1330 = vshrl.u32 %v1329, 7
        %v1331 = vsub.s32 0, %v1330
        %v1332 = vrot.slane %v1327, %v1331
        %v1335 = vsel %vm348, %v1323, 0
        %v1338 = vsel %vm348, %v1324, 0
        %1340 = vmatprep.subr.mxu0 0.0
        %1341 = vmatpush1.msra.mxu0 0.0
        %1342 = vmatprep.subr.mxu0 0.0
        %1343 = vmatpush1.msra.mxu0 0.0
        %1344 = vmatprep.subr.mxu0 0.0
        %1345 = vmatpush1.msra.mxu0 0.0
        %1346 = vmatprep.subr.mxu0 0.0
        %1347 = vmatpush1.msra.mxu0 0.0
        %1348 = vmatprep.subr.mxu0 0.0
        %1349 = vmatpush1.msra.mxu0 0.0
        %1350 = vmatprep.subr.mxu0 0.0
        %1351 = vmatpush1.msra.mxu0 0.0
        %1352 = vmatprep.subr.mxu0 0.0
        %1353 = vmatpush1.msra.mxu0 0.0
        %1354 = vmatprep.subr.mxu0 0.0
        %1355 = vmatpush1.msra.mxu0 0.0
        %1356 = vmatprep.subr.mxu0 0.0
        %1357 = vmatpush1.msra.mxu0 0.0
        %1358 = vmatprep.subr.mxu0 0.0
        %1359 = vmatpush1.msra.mxu0 0.0
        %1360 = vmatprep.subr.mxu0 0.0
        %1361 = vmatpush1.msra.mxu0 0.0
        %1362 = vmatprep.subr.mxu0 0.0
        %1363 = vmatpush1.msra.mxu0 0.0
        %1364 = vmatprep.subr.mxu0 0.0
        %1365 = vmatpush1.msra.mxu0 0.0
        %1366 = vmatprep.subr.mxu0 0.0
        %1367 = vmatpush1.msra.mxu0 0.0
        %1368 = vmatprep.subr.mxu0 0.0
        %1369 = vmatpush1.msra.mxu0 %v1326
        %1370 = vmatprep.subr.mxu0 0.0
        %1371 = vmatpush1.msra.mxu0 %v1325
        %1372 = vmatprep.subr.mxu0 0.0
        %1373 = vmatpush2.msra.mxu0 0.0
        %1374 = vmatprep.subr.mxu0 0.0
        %1375 = vmatpush2.msra.mxu0 0.0
        %1376 = vmatprep.subr.mxu0 0.0
        %1377 = vmatpush2.msra.mxu0 0.0
        %1378 = vmatprep.subr.mxu0 0.0
        %1379 = vmatpush2.msra.mxu0 0.0
        %1380 = vmatprep.subr.mxu0 0.0
        %1381 = vmatpush2.msra.mxu0 0.0
        %1382 = vmatprep.subr.mxu0 0.0
        %1383 = vmatpush2.msra.mxu0 0.0
        %1384 = vmatprep.subr.mxu0 0.0
        %1385 = vmatpush2.msra.mxu0 0.0
        %1386 = vmatprep.subr.mxu0 0.0
        %1387 = vmatpush2.msra.mxu0 0.0
        %1388 = vmatprep.subr.mxu0 0.0
        %1389 = vmatpush2.msra.mxu0 0.0
        %1390 = vmatprep.subr.mxu0 0.0
        %1391 = vmatpush2.msra.mxu0 0.0
        %1392 = vmatprep.subr.mxu0 0.0
        %1393 = vmatpush2.msra.mxu0 0.0
        %1394 = vmatprep.subr.mxu0 0.0
        %1395 = vmatpush2.msra.mxu0 0.0
        %1396 = vmatprep.subr.mxu0 0.0
        %1397 = vmatpush2.msra.mxu0 0.0
        %1398 = vmatprep.subr.mxu0 0.0
        %1399 = vmatpush2.msra.mxu0 0.0
        %1400 = vmatprep.subr.mxu0 0.0
        %1401 = vmatpush2.msra.mxu0 0.0
        %1402 = vmatprep.subr.mxu0 0.0
        %1403 = vmatpush2.msra.mxu0 0.0
        %1404 = vmatprep.mubr.f32.mxu0 0.0
        %1405 = vmatmul.mubr.f32.gmra.mxu0 %v1335
        %v1406 = vpop.f32.mrf.mxu0
        %v1407 = vadd.f32 %v1332, %v1406
        %v1408 = vpop.f32.mrf.mxu0
        %1409 = vmatprep.mubr.f32.mxu0 0.0
        %1410 = vmatmul.mubr.f32.gmra.mxu0 %v1338
        %v1411 = vpop.f32.mrf.mxu0
        %v1412 = vadd.f32 %v1332, %v1411
        %v1413 = vpop.f32.mrf.mxu0
        %1414 = vdwg.mxu0
        %1415 = vst [vmem:[%s329] sm:$0xff] %v1407
        %1416 = vst [vmem:[%s329 + $0x8] sm:$0xff] %v1412
        %s1417 = sand.u32 %s205, 1
        %s1418 = scalar_lea.sflag [#allocation4], %s1417
        %s1419 = sand.u32 %s205, 1
        %s1420 = smul.addr %s1419, 16
        %s1421 = scalar_lea.vmem [#allocation7], %s1420
        // Predicated region
        $region61: #{tpu_custom_call.1} parent=51 // pred_check
          %p1422 = pneg %p215
        $region62: #{tpu_custom_call.1} parent=51 // pred_check_branch
          %1424 = sbr.rel (%p1422) target = $region64
        $region63: #{tpu_custom_call.1} parent=51 // pred_region
          %s1425 = smul.u32 2, %s24
          %s1427 = ssub.s32 256, 256
          %1428 = vsyncadd %s1418, %s1427
          %s1429 = smul.addr %s1425, 128
          %s1430 = scalar_lea.hbm %s8, %s1429
          %s1431 = sshll.u32 %s1421, 4
          %s1432 = int_to_ptr.vmem [resolvable:$true] %s1431
          %1437 = dma.vmem_to_hbm [thread:$0]  %s1432, 256, %s1430, %s1418, 128, 128, 8
        $region64: #{tpu_custom_call.1} parent=51 // pred_fallthru
          _
      $region52: #{tpu_custom_call.1} parent=5 // pred_fallthru
        _
      %p1438 = scmp.le.s32.totalorder 2, %s19
      // Predicated region
      $region65: #{tpu_custom_call.1} parent=5 // pred_check
        %p1439 = pneg %p1438
      $region66: #{tpu_custom_call.1} parent=5 // pred_check_branch
        %1441 = sbr.rel (%p1439) target = $region68
      $region67: #{tpu_custom_call.1} parent=5 // pred_region
        %s1442 = ssub.s32 %s19, 2
        // Predicated region
        $region69: #{tpu_custom_call.1} parent=67 // pred_check
          %p1443 = pneg %p221
        $region70: #{tpu_custom_call.1} parent=67 // pred_check_branch
          %1445 = sbr.rel (%p1443) target = $region72
        $region71: #{tpu_custom_call.1} parent=67 // pred_region
          %s1446 = sand.u32 %s206, 1
          %s1447 = scalar_lea.sflag [#allocation4], %s1446
          %s1448 = sand.u32 %s206, 1
          %s1449 = smul.addr %s1448, 16
          %s1450 = scalar_lea.vmem [#allocation7], %s1449
          %1451 = dma.done %s1447, 256
        $region72: #{tpu_custom_call.1} parent=67 // pred_fallthru
          _
      $region68: #{tpu_custom_call.1} parent=5 // pred_fallthru
        _
    $region6: #{tpu_custom_call.1} parent=1 // loop_footer
      %s23 = sadd.s32 1, %s19
    $region7: #{tpu_custom_call.1} parent=1 // loop_footer_branch
      %18 = sbr.rel target = $region3
    $region8: #{tpu_custom_call.1} parent=1 // loop_exit
      _
    %1452 = vsyncpa [#allocation3], 1
    %s1453 = scalar_lea.sflag [#allocation3], 1
    %1454 = vsyncpa %s1453, 1
    %1455 = vsyncpa [#allocation6], 1
    %1456 = vsyncpa [#allocation4], 1
    %s1457 = scalar_lea.sflag [#allocation4], 1
    %1458 = vsyncpa %s1457, 1

</llo_original>
